<compile_context>
chip_gen: v6e
topology: v6e:2x2x1
jax: 0.10.0
libtpu: 0.0.40
codegen_flags: <defaults>
</compile_context>

<pallas_src>
import functools
import math

import jax
import jax.numpy as jnp
import numpy as np
from jax.experimental import pallas as pl
from jax.experimental.pallas import tpu as pltpu


# --------------------------------------------------------------------------- #
# Kernel
# --------------------------------------------------------------------------- #
def topksae_kernel(x_ref, b_ref, wenc_ref, wdec_ref, z_ref, recon_ref,
                   z_scratch, recon_acc, *, k, nt, tn):
    """Two-phase (encode / top-k / decode) body over the j = 0..2*nt-1 axis."""
    j = pl.program_id(1)

    # ---------------- encode phase: one (bm, tn) slab of z per step ----------
    @pl.when(j < nt)
    def _encode():
        x = x_ref[...]
        if x.dtype == wenc_ref.dtype:
            xc = x - b_ref[...].astype(x.dtype)
        else:
            xc = (x.astype(jnp.float32) - b_ref[...]).astype(wenc_ref.dtype)
        zj = jnp.dot(xc, wenc_ref[...], preferred_element_type=jnp.float32)
        col = pl.multiple_of(j * tn, 128)
        z_scratch[:, pl.ds(col, tn)] = jnp.maximum(zj, 0.0)

    # ---------------- top-k over the full (bm, n_pad) scratch, once ----------
    @pl.when(j == nt)
    def _topk():
        neg = jnp.float32(-1.0)

        def drop_max(w):
            m = jnp.max(w, axis=-1, keepdims=True)          # one XLU reduce / pass
            sel = jnp.logical_and(w == m, m >= 0.0)          # z >= 0 post-relu
            return jnp.where(sel, neg, w)

        w = z_scratch[...]
        if k <= 8:
            for _ in range(k):                               # full unroll, small k
                w = drop_max(w)
        else:
            w = jax.lax.fori_loop(0, k, lambda _, ww: drop_max(ww), w, unroll=4)

        # keep only the marked (negative) positions; everything else -> 0
        z_scratch[...] = jnp.where(w < 0.0, z_scratch[...], 0.0)
        recon_acc[...] = jnp.zeros_like(recon_acc)

    # ---------------- decode phase: accumulate recon, emit z blocks ----------
    @pl.when(j >= nt)
    def _decode():
        jj = j - nt
        col = pl.multiple_of(jj * tn, 128)
        z_blk = z_scratch[:, pl.ds(col, tn)]
        z_ref[...] = z_blk.astype(z_ref.dtype)
        recon_acc[...] += jnp.dot(z_blk.astype(wdec_ref.dtype), wdec_ref[...],
                                  preferred_element_type=jnp.float32)

    @pl.when(j == 2 * nt - 1)
    def _finish():
        recon_ref[...] = (recon_acc[...] + b_ref[...].astype(jnp.float32)
                          ).astype(recon_ref.dtype)


# --------------------------------------------------------------------------- #
# Planning helpers
# --------------------------------------------------------------------------- #
def _round_up(v, m):
    return ((v + m - 1) // m) * m


@functools.lru_cache(maxsize=1)
def _tpu_vmem_capacity():
    # One-time capability probe; conservative 64 MiB (v7x per-TC) fallback.
    try:
        return int(pltpu.get_tpu_info().vmem_capacity_bytes)
    except Exception:
        return 64 << 20


def _vmem_need(bm, d_pad, n_pad, tn, x_item, w_item, out_item):
    x_tiles = 2 * bm * d_pad * x_item                    # double-buffered x tile
    bias = 2 * d_pad * 4
    w_blocks = 2 * 2 * d_pad * tn * w_item               # enc + dec, double-buffered
    z_out = 2 * bm * tn * out_item
    r_out = 2 * bm * d_pad * out_item
    z_scr = bm * n_pad * 4
    r_acc = bm * d_pad * 4
    topk_tmp = 2 * bm * n_pad * 4                        # fori carry + select temp
    return x_tiles + bias + w_blocks + z_out + r_out + z_scr + r_acc + topk_tmp + (4 << 20)


def _plan(B, d, n, x_item, w_item, out_item, max_tn=None):
    cap = _tpu_vmem_capacity()
    usable = max(24 << 20, cap - (8 << 20))              # stay under physical VMEM

    d_pad = _round_up(d, 128)

    # latent-dim block size: budget ~35% of usable VMEM for the two streamed,
    # double-buffered weight blocks.
    w_budget = max(8 << 20, int(usable * 0.35))
    tn = w_budget // (4 * d_pad * w_item)
    tn = max(128, (tn // 128) * 128)
    tn = min(tn, _round_up(n, 128))
    if max_tn is not None:
        tn = min(tn, max(128, (max_tn // 128) * 128))
    n_pad = _round_up(n, tn)
    nt = n_pad // tn

    # batch tile: 128 on 64 MiB parts (v7x), 256 on larger-VMEM parts.
    bm = 256 if usable >= (96 << 20) else 128
    bm = min(bm, _round_up(B, 8))
    # prefer >= 2 batch tiles so the "parallel" axis can split across cores
    if B >= 16 and _round_up(B, bm) // bm < 2:
        bm = min(bm, _round_up((B + 1) // 2, 8))
    # shrink bm, then tn, until the working set fits the scoped-VMEM budget
    while bm > 8 and _vmem_need(bm, d_pad, n_pad, tn, x_item, w_item, out_item) > usable:
        bm = max(8, ((bm // 2) + 7) // 8 * 8)
    while tn > 128 and _vmem_need(bm, d_pad, n_pad, tn, x_item, w_item, out_item) > usable:
        tn = max(128, ((tn // 2) // 128) * 128)
        n_pad = _round_up(n, tn)
        nt = n_pad // tn

    B_pad = _round_up(B, bm)
    need = _vmem_need(bm, d_pad, n_pad, tn, x_item, w_item, out_item)
    vmem_limit = int(min(max(need, 32 << 20), usable))
    return bm, tn, nt, d_pad, n_pad, B_pad, vmem_limit


# --------------------------------------------------------------------------- #
# Cached compiled forward
# --------------------------------------------------------------------------- #
@functools.lru_cache(maxsize=None)
def _compiled_forward(B, d, n, k, x_dtype_name, xin_dtype_name, w_dtype_name, max_tn):
    x_dtype = jnp.dtype(x_dtype_name)
    xin_dtype = jnp.dtype(xin_dtype_name)
    w_dtype = jnp.dtype(w_dtype_name)
    out_dtype = x_dtype

    bm, tn, nt, d_pad, n_pad, B_pad, vmem_limit = _plan(
        B, d, n, xin_dtype.itemsize, w_dtype.itemsize, out_dtype.itemsize, max_tn)

    call = pl.pallas_call(
        functools.partial(topksae_kernel, k=k, nt=nt, tn=tn),
        out_shape=(
            jax.ShapeDtypeStruct((B_pad, n_pad), out_dtype),
            jax.ShapeDtypeStruct((B_pad, d_pad), out_dtype),
        ),
        grid_spec=pltpu.PrefetchScalarGridSpec(
            num_scalar_prefetch=0,
            grid=(B_pad // bm, 2 * nt),
            in_specs=[
                pl.BlockSpec((bm, d_pad), lambda i, j: (i, 0)),                       # x tile
                pl.BlockSpec((1, d_pad), lambda i, j: (0, 0)),                        # bias row
                pl.BlockSpec((d_pad, tn),                                             # W_enc.T block
                             lambda i, j: (0, jnp.minimum(j, nt - 1))),
                pl.BlockSpec((tn, d_pad),                                             # W_dec.T block
                             lambda i, j: (jnp.maximum(j - nt, 0), 0)),
            ],
            out_specs=[
                pl.BlockSpec((bm, tn), lambda i, j: (i, jnp.maximum(j - nt, 0))),     # z blocks
                pl.BlockSpec((bm, d_pad), lambda i, j: (i, 0)),                       # recon tile
            ],
            scratch_shapes=[
                pltpu.VMEM((bm, n_pad), jnp.float32),   # full-row z / z_top
                pltpu.VMEM((bm, d_pad), jnp.float32),   # recon accumulator
            ],
        ),
        compiler_params=pltpu.CompilerParams(
            dimension_semantics=("parallel", "arbitrary"),
            vmem_limit_bytes=vmem_limit,
        ),
    )

    @jax.jit
    def fwd(x, W_enc, W_dec, b):
        xp = x.astype(xin_dtype)
        if (B_pad, d_pad) != (B, d):
            xp = jnp.zeros((B_pad, d_pad), xin_dtype).at[:B, :d].set(xp)

        bp = b.astype(jnp.float32).reshape(1, d)
        if d_pad != d:
            bp = jnp.zeros((1, d_pad), jnp.float32).at[:, :d].set(bp)

        wenc_t = W_enc.T.astype(w_dtype)            # (d, n)
        wdec_t = W_dec.T.astype(w_dtype)            # (n, d)
        if (d_pad, n_pad) != (d, n):
            wenc_t = jnp.zeros((d_pad, n_pad), w_dtype).at[:d, :n].set(wenc_t)
            wdec_t = jnp.zeros((n_pad, d_pad), w_dtype).at[:n, :d].set(wdec_t)

        z_p, recon_p = call(xp, bp, wenc_t, wdec_t)
        return z_p[:B, :n], recon_p[:B, :d]

    return fwd


def topksae_forward(x, W_enc, W_dec, b, k, *, weights_dtype=jnp.bfloat16, max_tn=None):
    """Returns (x, z, recon) matching TopKSAE.forward.

    weights_dtype: matmul dtype (bf16 by default on all generations; MXU
    accumulation, relu and top-k stay f32).  max_tn: optional cap on the
    latent-dim streaming block (tuning / test hook).
    """
    B, d = x.shape
    n = W_enc.shape[0]
    assert W_enc.shape == (n, d) and W_dec.shape == (d, n) and b.shape == (d,)
    assert 1 <= k <= n

    x_dtype = jnp.dtype(x.dtype)
    w_dtype = jnp.dtype(weights_dtype)
    # ship x in the narrow dtype when the matmuls run narrow (halves the x DMA)
    xin_dtype = w_dtype if w_dtype.itemsize < x_dtype.itemsize else x_dtype

    fwd = _compiled_forward(B, d, n, int(k), x_dtype.name, xin_dtype.name,
                            w_dtype.name, max_tn)
    z, recon = fwd(x, W_enc, W_dec, b)
    return x, z, recon


# --------------------------------------------------------------------------- #
# Pure-JAX reference (mirrors the PyTorch module)
# --------------------------------------------------------------------------- #
def ref_forward(x, W_enc, W_dec, b, k):
    z = (x - b) @ W_enc.T
    z = jnp.maximum(z, 0.0)
    _, idx = jax.lax.top_k(z, k)
    mask = jnp.zeros_like(z).at[jnp.arange(z.shape[0])[:, None], idx].set(1.0)
    z = z * mask
    recon = z @ W_dec.T + b
    return x, z, recon


if __name__ == "__main__":
    # Small shapes consistent with the module; deliberately non-128-aligned to
    # exercise the padding paths.
    B, d, n, k = 32, 96, 320, 8

    key = jax.random.PRNGKey(0)
    k_w, k_x, k_b = jax.random.split(key, 3)

    # Param init mirroring __init__ (W_dec randn/sqrt(d), column-normalized;
    # W_enc = W_dec.T).  Bias set nonzero here to exercise the -b / +b paths.
    W_dec = jax.random.normal(k_w, (d, n), dtype=jnp.float32) / math.sqrt(d)
    W_dec = W_dec / jnp.linalg.norm(W_dec, axis=0, keepdims=True)
    W_enc = W_dec.T
    b = 0.1 * jax.random.normal(k_b, (d,), dtype=jnp.float32)

    x = jax.random.normal(k_x, (B, d), dtype=jnp.float32)

    # 1) f32 path, single weight block (nt == 1): tight check vs reference.
    x_out, z_out, recon_out = topksae_forward(x, W_enc, W_dec, b, k,
                                              weights_dtype=jnp.float32)
    jax.block_until_ready((z_out, recon_out))
    _, z_ref, recon_ref = ref_forward(x, W_enc, W_dec, b, k)
    np.testing.assert_allclose(np.asarray(z_out), np.asarray(z_ref),
                               rtol=1e-4, atol=1e-4)
    np.testing.assert_allclose(np.asarray(recon_out), np.asarray(recon_ref),
                               rtol=1e-4, atol=1e-4)
    np.testing.assert_allclose(np.asarray(x_out), np.asarray(x))

    # 2) f32 path with forced weight streaming (nt > 1) and large-k fori path.
    k2 = 20
    _, z_s, recon_s = topksae_forward(x, W_enc, W_dec, b, k2,
                                      weights_dtype=jnp.float32, max_tn=128)
    jax.block_until_ready((z_s, recon_s))
    _, z_ref2, recon_ref2 = ref_forward(x, W_enc, W_dec, b, k2)
    np.testing.assert_allclose(np.asarray(z_s), np.asarray(z_ref2),
                               rtol=1e-4, atol=1e-4)
    np.testing.assert_allclose(np.asarray(recon_s), np.asarray(recon_ref2),
                               rtol=1e-4, atol=1e-4)

    # 3) default (bf16 weights) path: smoke run + finiteness.  Top-k membership
    # near the k-th threshold can legitimately differ under bf16, so no
    # elementwise comparison against the f32 reference.
    _, z_bf, recon_bf = topksae_forward(x, W_enc, W_dec, b, k)
    jax.block_until_ready((z_bf, recon_bf))
    assert bool(jnp.all(jnp.isfinite(z_bf))) and bool(jnp.all(jnp.isfinite(recon_bf)))

    print("KERNEL_OK")
</pallas_src>

<mosaic_0001>
module attributes {stable_mosaic.version = 11 : i64} {
  func.func @topksae_kernel(%arg0: i32, %arg1: i32, %arg2: memref<16x128xf32, #tpu.memory_space<vmem>>, %arg3: memref<1x128xf32, #tpu.memory_space<vmem>>, %arg4: memref<128x384xf32, #tpu.memory_space<vmem>>, %arg5: memref<384x128xf32, #tpu.memory_space<vmem>>, %arg6: memref<16x384xf32, #tpu.memory_space<vmem>>, %arg7: memref<16x128xf32, #tpu.memory_space<vmem>>, %arg8: memref<16x384xf32, #tpu.memory_space<vmem>>, %arg9: memref<16x128xf32, #tpu.memory_space<vmem>>) attributes {dimension_semantics = [#tpu.dimension_semantics<parallel>, #tpu.dimension_semantics<arbitrary>], iteration_bounds = array<i64: 2, 2>, scalar_prefetch = 0 : i64, scratch_operands = 2 : i64, tpu.core_type = #tpu.core_type<tc>, window_params = [{transform_indices = @transform_0, window_bounds = array<i64: 16, 128>}, {pipeline_mode = #tpu.pipeline_mode<synchronous>, transform_indices = @transform_1, window_bounds = array<i64: 1, 128>}, {transform_indices = @transform_2, window_bounds = array<i64: 128, 384>}, {transform_indices = @transform_3, window_bounds = array<i64: 384, 128>}, {transform_indices = @transform_4, window_bounds = array<i64: 16, 384>}, {transform_indices = @transform_5, window_bounds = array<i64: 16, 128>}]} {
    %c1_i32 = arith.constant 1 : i32
    %0 = arith.cmpi slt, %arg1, %c1_i32 : i32
    %1 = arith.extui %0 : i1 to i32
    %c0_i32 = arith.constant 0 : i32
    %2 = arith.cmpi ne, %1, %c0_i32 : i32
    scf.if %2 {
      %c0 = arith.constant 0 : index
      %c0_6 = arith.constant 0 : index
      %12 = vector.load %arg2[%c0, %c0_6] : memref<16x128xf32, #tpu.memory_space<vmem>>, vector<16x128xf32>
      %c0_7 = arith.constant 0 : index
      %c0_8 = arith.constant 0 : index
      %13 = vector.load %arg3[%c0_7, %c0_8] : memref<1x128xf32, #tpu.memory_space<vmem>>, vector<1x128xf32>
      %14 = vector.broadcast %13 : vector<1x128xf32> to vector<16x128xf32>
      %15 = arith.subf %12, %14 : vector<16x128xf32>
      %c0_9 = arith.constant 0 : index
      %c0_10 = arith.constant 0 : index
      %16 = vector.load %arg4[%c0_9, %c0_10] : memref<128x384xf32, #tpu.memory_space<vmem>>, vector<128x384xf32>
      %cst = arith.constant dense<0.000000e+00> : vector<16x384xf32>
      %17 = tpu.matmul %15, %16, %cst {dimension_numbers = #tpu.dot_dimension_numbers<[1], [0], [0], [1], [0, 0, 1, 1], [], []>} : vector<16x128xf32>, vector<128x384xf32>, vector<16x384xf32> -> vector<16x384xf32>
      %c384_i32 = arith.constant 384 : i32
      %18 = arith.muli %arg1, %c384_i32 : i32
      %19 = tpu.assume_multiple %18, 128 : i32
      %cst_11 = arith.constant 0.000000e+00 : f32
      %20 = vector.broadcast %cst_11 : f32 to vector<16x384xf32>
      %21 = arith.maximumf %17, %20 : vector<16x384xf32>
      %c0_12 = arith.constant 0 : index
      %22 = arith.index_cast %19 : i32 to index
      %23 = vector.load %arg8[%c0_12, %22] : memref<16x384xf32, #tpu.memory_space<vmem>>, vector<16x384xf32>
      tpu.vector_store %arg8[%c0_12, %22], %21 {strides = array<i32>} : memref<16x384xf32, #tpu.memory_space<vmem>>, vector<16x384xf32>,
    } else {
    }
    %c1_i32_0 = arith.constant 1 : i32
    %3 = arith.cmpi eq, %arg1, %c1_i32_0 : i32
    %4 = arith.extui %3 : i1 to i32
    %c0_i32_1 = arith.constant 0 : i32
    %5 = arith.cmpi ne, %4, %c0_i32_1 : i32
    scf.if %5 {
      %c0 = arith.constant 0 : index
      %c0_6 = arith.constant 0 : index
      %12 = vector.load %arg8[%c0, %c0_6] : memref<16x384xf32, #tpu.memory_space<vmem>>, vector<16x384xf32>
      %cst = arith.constant dense<0xFF800000> : vector<16xf32>
      %13 = vector.multi_reduction <maximumf>, %12, %cst [1] : vector<16x384xf32> to vector<16xf32>
      %14 = vector.shape_cast %13 : vector<16xf32> to vector<16x1xf32>
      %15 = vector.broadcast %14 : vector<16x1xf32> to vector<16x384xf32>
      %16 = arith.cmpf oeq, %12, %15 : vector<16x384xf32>
      %cst_7 = arith.constant 0.000000e+00 : f32
      %17 = vector.broadcast %cst_7 : f32 to vector<16x1xf32>
      %18 = arith.cmpf oge, %14, %17 : vector<16x1xf32>
      %19 = vector.broadcast %18 : vector<16x1xi1> to vector<16x384xi1>
      %20 = arith.andi %16, %19 : vector<16x384xi1>
      %cst_8 = arith.constant -1.000000e+00 : f32
      %21 = vector.broadcast %cst_8 : f32 to vector<16x384xf32>
      %22 = arith.select %20, %21, %12 : vector<16x384xi1>, vector<16x384xf32>
      %cst_9 = arith.constant dense<0xFF800000> : vector<16xf32>
      %23 = vector.multi_reduction <maximumf>, %22, %cst_9 [1] : vector<16x384xf32> to vector<16xf32>
      %24 = vector.shape_cast %23 : vector<16xf32> to vector<16x1xf32>
      %25 = vector.broadcast %24 : vector<16x1xf32> to vector<16x384xf32>
      %26 = arith.cmpf oeq, %22, %25 : vector<16x384xf32>
      %cst_10 = arith.constant 0.000000e+00 : f32
      %27 = vector.broadcast %cst_10 : f32 to vector<16x1xf32>
      %28 = arith.cmpf oge, %24, %27 : vector<16x1xf32>
      %29 = vector.broadcast %28 : vector<16x1xi1> to vector<16x384xi1>
      %30 = arith.andi %26, %29 : vector<16x384xi1>
      %cst_11 = arith.constant -1.000000e+00 : f32
      %31 = vector.broadcast %cst_11 : f32 to vector<16x384xf32>
      %32 = arith.select %30, %31, %22 : vector<16x384xi1>, vector<16x384xf32>
      %cst_12 = arith.constant dense<0xFF800000> : vector<16xf32>
      %33 = vector.multi_reduction <maximumf>, %32, %cst_12 [1] : vector<16x384xf32> to vector<16xf32>
      %34 = vector.shape_cast %33 : vector<16xf32> to vector<16x1xf32>
      %35 = vector.broadcast %34 : vector<16x1xf32> to vector<16x384xf32>
      %36 = arith.cmpf oeq, %32, %35 : vector<16x384xf32>
      %cst_13 = arith.constant 0.000000e+00 : f32
      %37 = vector.broadcast %cst_13 : f32 to vector<16x1xf32>
      %38 = arith.cmpf oge, %34, %37 : vector<16x1xf32>
      %39 = vector.broadcast %38 : vector<16x1xi1> to vector<16x384xi1>
      %40 = arith.andi %36, %39 : vector<16x384xi1>
      %cst_14 = arith.constant -1.000000e+00 : f32
      %41 = vector.broadcast %cst_14 : f32 to vector<16x384xf32>
      %42 = arith.select %40, %41, %32 : vector<16x384xi1>, vector<16x384xf32>
      %cst_15 = arith.constant dense<0xFF800000> : vector<16xf32>
      %43 = vector.multi_reduction <maximumf>, %42, %cst_15 [1] : vector<16x384xf32> to vector<16xf32>
      %44 = vector.shape_cast %43 : vector<16xf32> to vector<16x1xf32>
      %45 = vector.broadcast %44 : vector<16x1xf32> to vector<16x384xf32>
      %46 = arith.cmpf oeq, %42, %45 : vector<16x384xf32>
      %cst_16 = arith.constant 0.000000e+00 : f32
      %47 = vector.broadcast %cst_16 : f32 to vector<16x1xf32>
      %48 = arith.cmpf oge, %44, %47 : vector<16x1xf32>
      %49 = vector.broadcast %48 : vector<16x1xi1> to vector<16x384xi1>
      %50 = arith.andi %46, %49 : vector<16x384xi1>
      %cst_17 = arith.constant -1.000000e+00 : f32
      %51 = vector.broadcast %cst_17 : f32 to vector<16x384xf32>
      %52 = arith.select %50, %51, %42 : vector<16x384xi1>, vector<16x384xf32>
      %cst_18 = arith.constant dense<0xFF800000> : vector<16xf32>
      %53 = vector.multi_reduction <maximumf>, %52, %cst_18 [1] : vector<16x384xf32> to vector<16xf32>
      %54 = vector.shape_cast %53 : vector<16xf32> to vector<16x1xf32>
      %55 = vector.broadcast %54 : vector<16x1xf32> to vector<16x384xf32>
      %56 = arith.cmpf oeq, %52, %55 : vector<16x384xf32>
      %cst_19 = arith.constant 0.000000e+00 : f32
      %57 = vector.broadcast %cst_19 : f32 to vector<16x1xf32>
      %58 = arith.cmpf oge, %54, %57 : vector<16x1xf32>
      %59 = vector.broadcast %58 : vector<16x1xi1> to vector<16x384xi1>
      %60 = arith.andi %56, %59 : vector<16x384xi1>
      %cst_20 = arith.constant -1.000000e+00 : f32
      %61 = vector.broadcast %cst_20 : f32 to vector<16x384xf32>
      %62 = arith.select %60, %61, %52 : vector<16x384xi1>, vector<16x384xf32>
      %cst_21 = arith.constant dense<0xFF800000> : vector<16xf32>
      %63 = vector.multi_reduction <maximumf>, %62, %cst_21 [1] : vector<16x384xf32> to vector<16xf32>
      %64 = vector.shape_cast %63 : vector<16xf32> to vector<16x1xf32>
      %65 = vector.broadcast %64 : vector<16x1xf32> to vector<16x384xf32>
      %66 = arith.cmpf oeq, %62, %65 : vector<16x384xf32>
      %cst_22 = arith.constant 0.000000e+00 : f32
      %67 = vector.broadcast %cst_22 : f32 to vector<16x1xf32>
      %68 = arith.cmpf oge, %64, %67 : vector<16x1xf32>
      %69 = vector.broadcast %68 : vector<16x1xi1> to vector<16x384xi1>
      %70 = arith.andi %66, %69 : vector<16x384xi1>
      %cst_23 = arith.constant -1.000000e+00 : f32
      %71 = vector.broadcast %cst_23 : f32 to vector<16x384xf32>
      %72 = arith.select %70, %71, %62 : vector<16x384xi1>, vector<16x384xf32>
      %cst_24 = arith.constant dense<0xFF800000> : vector<16xf32>
      %73 = vector.multi_reduction <maximumf>, %72, %cst_24 [1] : vector<16x384xf32> to vector<16xf32>
      %74 = vector.shape_cast %73 : vector<16xf32> to vector<16x1xf32>
      %75 = vector.broadcast %74 : vector<16x1xf32> to vector<16x384xf32>
      %76 = arith.cmpf oeq, %72, %75 : vector<16x384xf32>
      %cst_25 = arith.constant 0.000000e+00 : f32
      %77 = vector.broadcast %cst_25 : f32 to vector<16x1xf32>
      %78 = arith.cmpf oge, %74, %77 : vector<16x1xf32>
      %79 = vector.broadcast %78 : vector<16x1xi1> to vector<16x384xi1>
      %80 = arith.andi %76, %79 : vector<16x384xi1>
      %cst_26 = arith.constant -1.000000e+00 : f32
      %81 = vector.broadcast %cst_26 : f32 to vector<16x384xf32>
      %82 = arith.select %80, %81, %72 : vector<16x384xi1>, vector<16x384xf32>
      %cst_27 = arith.constant dense<0xFF800000> : vector<16xf32>
      %83 = vector.multi_reduction <maximumf>, %82, %cst_27 [1] : vector<16x384xf32> to vector<16xf32>
      %84 = vector.shape_cast %83 : vector<16xf32> to vector<16x1xf32>
      %85 = vector.broadcast %84 : vector<16x1xf32> to vector<16x384xf32>
      %86 = arith.cmpf oeq, %82, %85 : vector<16x384xf32>
      %cst_28 = arith.constant 0.000000e+00 : f32
      %87 = vector.broadcast %cst_28 : f32 to vector<16x1xf32>
      %88 = arith.cmpf oge, %84, %87 : vector<16x1xf32>
      %89 = vector.broadcast %88 : vector<16x1xi1> to vector<16x384xi1>
      %90 = arith.andi %86, %89 : vector<16x384xi1>
      %cst_29 = arith.constant -1.000000e+00 : f32
      %91 = vector.broadcast %cst_29 : f32 to vector<16x384xf32>
      %92 = arith.select %90, %91, %82 : vector<16x384xi1>, vector<16x384xf32>
      %cst_30 = arith.constant 0.000000e+00 : f32
      %93 = vector.broadcast %cst_30 : f32 to vector<16x384xf32>
      %94 = arith.cmpf olt, %92, %93 : vector<16x384xf32>
      %c0_31 = arith.constant 0 : index
      %c0_32 = arith.constant 0 : index
      %95 = vector.load %arg8[%c0_31, %c0_32] : memref<16x384xf32, #tpu.memory_space<vmem>>, vector<16x384xf32>
      %cst_33 = arith.constant 0.000000e+00 : f32
      %96 = vector.broadcast %cst_33 : f32 to vector<16x384xf32>
      %97 = arith.select %94, %95, %96 : vector<16x384xi1>, vector<16x384xf32>
      %c0_34 = arith.constant 0 : index
      %c0_35 = arith.constant 0 : index
      %98 = vector.load %arg8[%c0_34, %c0_35] : memref<16x384xf32, #tpu.memory_space<vmem>>, vector<16x384xf32>
      tpu.vector_store %arg8[%c0_34, %c0_35], %97 {strides = array<i32>} : memref<16x384xf32, #tpu.memory_space<vmem>>, vector<16x384xf32>,
      %cst_36 = arith.constant 0.000000e+00 : f32
      %99 = vector.broadcast %cst_36 : f32 to vector<16x128xf32>
      %c0_37 = arith.constant 0 : index
      %c0_38 = arith.constant 0 : index
      %100 = vector.load %arg9[%c0_37, %c0_38] : memref<16x128xf32, #tpu.memory_space<vmem>>, vector<16x128xf32>
      tpu.vector_store %arg9[%c0_37, %c0_38], %99 {strides = array<i32>} : memref<16x128xf32, #tpu.memory_space<vmem>>, vector<16x128xf32>,
    } else {
    }
    %c1_i32_2 = arith.constant 1 : i32
    %6 = arith.cmpi sge, %arg1, %c1_i32_2 : i32
    %7 = arith.extui %6 : i1 to i32
    %c0_i32_3 = arith.constant 0 : i32
    %8 = arith.cmpi ne, %7, %c0_i32_3 : i32
    scf.if %8 {
      %c1_i32_6 = arith.constant 1 : i32
      %12 = arith.subi %arg1, %c1_i32_6 : i32
      %c384_i32 = arith.constant 384 : i32
      %13 = arith.muli %12, %c384_i32 : i32
      %14 = tpu.assume_multiple %13, 128 : i32
      %c0 = arith.constant 0 : index
      %15 = arith.index_cast %14 : i32 to index
      %16 = vector.load %arg8[%c0, %15] : memref<16x384xf32, #tpu.memory_space<vmem>>, vector<16x384xf32>
      %c0_7 = arith.constant 0 : index
      %c0_8 = arith.constant 0 : index
      %17 = vector.load %arg6[%c0_7, %c0_8] : memref<16x384xf32, #tpu.memory_space<vmem>>, vector<16x384xf32>
      tpu.vector_store %arg6[%c0_7, %c0_8], %16 {strides = array<i32>} : memref<16x384xf32, #tpu.memory_space<vmem>>, vector<16x384xf32>,
      %c0_9 = arith.constant 0 : index
      %c0_10 = arith.constant 0 : index
      %18 = vector.load %arg9[%c0_9, %c0_10] : memref<16x128xf32, #tpu.memory_space<vmem>>, vector<16x128xf32>
      %c0_11 = arith.constant 0 : index
      %c0_12 = arith.constant 0 : index
      %19 = vector.load %arg5[%c0_11, %c0_12] : memref<384x128xf32, #tpu.memory_space<vmem>>, vector<384x128xf32>
      %cst = arith.constant dense<0.000000e+00> : vector<16x128xf32>
      %20 = tpu.matmul %16, %19, %cst {dimension_numbers = #tpu.dot_dimension_numbers<[1], [0], [0], [1], [0, 0, 1, 1], [], []>} : vector<16x384xf32>, vector<384x128xf32>, vector<16x128xf32> -> vector<16x128xf32>
      %21 = arith.addf %18, %20 : vector<16x128xf32>
      %c0_13 = arith.constant 0 : index
      %c0_14 = arith.constant 0 : index
      %22 = vector.load %arg9[%c0_13, %c0_14] : memref<16x128xf32, #tpu.memory_space<vmem>>, vector<16x128xf32>
      tpu.vector_store %arg9[%c0_13, %c0_14], %21 {strides = array<i32>} : memref<16x128xf32, #tpu.memory_space<vmem>>, vector<16x128xf32>,
    } else {
    }
    %c1_i32_4 = arith.constant 1 : i32
    %9 = arith.cmpi eq, %arg1, %c1_i32_4 : i32
    %10 = arith.extui %9 : i1 to i32
    %c0_i32_5 = arith.constant 0 : i32
    %11 = arith.cmpi ne, %10, %c0_i32_5 : i32
    scf.if %11 {
      %c0 = arith.constant 0 : index
      %c0_6 = arith.constant 0 : index
      %12 = vector.load %arg9[%c0, %c0_6] : memref<16x128xf32, #tpu.memory_space<vmem>>, vector<16x128xf32>
      %c0_7 = arith.constant 0 : index
      %c0_8 = arith.constant 0 : index
      %13 = vector.load %arg3[%c0_7, %c0_8] : memref<1x128xf32, #tpu.memory_space<vmem>>, vector<1x128xf32>
      %14 = vector.broadcast %13 : vector<1x128xf32> to vector<16x128xf32>
      %15 = arith.addf %12, %14 : vector<16x128xf32>
      %c0_9 = arith.constant 0 : index
      %c0_10 = arith.constant 0 : index
      %16 = vector.load %arg7[%c0_9, %c0_10] : memref<16x128xf32, #tpu.memory_space<vmem>>, vector<16x128xf32>
      tpu.vector_store %arg7[%c0_9, %c0_10], %15 {strides = array<i32>} : memref<16x128xf32, #tpu.memory_space<vmem>>, vector<16x128xf32>,
    } else {
    }
    return
  }
  func.func @transform_0(%arg0: i32, %arg1: i32) -> (i32, i32) {
    %c0_i32 = arith.constant 0 : i32
    %c0_i32_0 = arith.constant 0 : i32
    return %arg0, %c0_i32 : i32, i32
  }
  func.func @transform_1(%arg0: i32, %arg1: i32) -> (i32, i32) {
    %c0_i32 = arith.constant 0 : i32
    %c0_i32_0 = arith.constant 0 : i32
    %c0_i32_1 = arith.constant 0 : i32
    return %c0_i32, %c0_i32_0 : i32, i32
  }
  func.func @transform_2(%arg0: i32, %arg1: i32) -> (i32, i32) {
    %c0_i32 = arith.constant 0 : i32
    %0 = arith.minsi %arg1, %c0_i32 : i32
    %c0_i32_0 = arith.constant 0 : i32
    %c0_i32_1 = arith.constant 0 : i32
    return %c0_i32_0, %0 : i32, i32
  }
  func.func @transform_3(%arg0: i32, %arg1: i32) -> (i32, i32) {
    %c1_i32 = arith.constant 1 : i32
    %0 = arith.subi %arg1, %c1_i32 : i32
    %c0_i32 = arith.constant 0 : i32
    %1 = arith.maxsi %0, %c0_i32 : i32
    %c0_i32_0 = arith.constant 0 : i32
    %c0_i32_1 = arith.constant 0 : i32
    return %1, %c0_i32_0 : i32, i32
  }
  func.func @transform_4(%arg0: i32, %arg1: i32) -> (i32, i32) {
    %c1_i32 = arith.constant 1 : i32
    %0 = arith.subi %arg1, %c1_i32 : i32
    %c0_i32 = arith.constant 0 : i32
    %1 = arith.maxsi %0, %c0_i32 : i32
    %c0_i32_0 = arith.constant 0 : i32
    return %arg0, %1 : i32, i32
  }
  func.func @transform_5(%arg0: i32, %arg1: i32) -> (i32, i32) {
    %c0_i32 = arith.constant 0 : i32
    %c0_i32_0 = arith.constant 0 : i32
    return %arg0, %c0_i32 : i32, i32
  }
}

</mosaic_0001>

<llo_original>
// kernel: fwd.1
$region0: #{fwd.1}
  #allocation0 [shape = 'u32[]', space=smem, size = 0x4, offset = 0x4, fixed_abs, tag = 'smem constant byte address 0x4 - core index']
  #allocation1 [shape = 'u32[144,128]{1,0:T(1,128)}', space=vmem, size = 0x12000, scoped, tag = 'internal scratch']
  #allocation2 [shape = 'f32[16,384]{1,0:T(8,128)}', space=vmem, size = 0x6000, scoped, tag = 'scratch operand']
  #allocation3 [shape = 'f32[16,128]{1,0:T(8,128)}', space=vmem, size = 0x2000, scoped, tag = 'scratch operand']
  %s0 = inlined_call_operand.vmem [shape: f32[32,128], index: 0, kind: input, shape index: {}]
  %s1 = inlined_call_operand.vmem [shape: f32[1,128], index: 1, kind: input, shape index: {}]
  %s2 = inlined_call_operand.vmem [shape: f32[128,384], index: 2, kind: input, shape index: {}]
  %s3 = inlined_call_operand.vmem [shape: f32[384,128], index: 3, kind: input, shape index: {}]
  %s4 = inlined_call_operand.hbm [shape: f32[32,384], index: 4, kind: output, shape index: {0}]
  %s5 = inlined_call_operand.hbm [shape: f32[32,128], index: 5, kind: output, shape index: {1}]
  %6 = xla_tuple %s4, %s5
  %s7 = sld [smem:[#allocation0]]
  $region73: #{fwd.1} parent=0
    _
  %s9 = ssub.s32 1, %s7
  %s10 = scalar_select 0, %s9, %s7
  $region1: #{fwd.1} parent=0
    #allocation4 [shape = 'u8[49152]{0}', space=vmem, size = 0xc000, scoped, tag = 'output window, operand 0']
    #allocation5 [shape = 's32[2]{0}', space=sflag, size = 0x8, scoped, tag = 'scoped memory for fwd.1']
    #allocation6 [shape = 'u8[16384]{0}', space=vmem, size = 0x4000, scoped, tag = 'output window, operand 1']
    #allocation7 [shape = 's32[2]{0}', space=sflag, size = 0x8, scoped, tag = 'scoped memory for fwd.1']
    %11 = vsyncpa [#allocation5], 0
    %s12 = scalar_lea.sflag [#allocation5], 1
    %13 = vsyncpa %s12, 0
    %14 = vsyncpa [#allocation7], 0
    %s15 = scalar_lea.sflag [#allocation7], 1
    %16 = vsyncpa %s15, 0
    loop: start=0, step=1, limit=6
    $region2: #{fwd.1} parent=1 // loop_pre_header
      _
    $region3: #{fwd.1} parent=1 // loop_header
      %s18 = sphi 0, %s22
      %p19 = scmp.ge.s32.totalorder %s18, 6
      %s25 = sphi 0, %s37
      %s26 = sphi 0, %s33
      %s27 = sphi 0, %s25
      %s28 = sphi 0, %s26
      %s29 = sphi 0, %s27
      %s30 = sphi 0, %s28
      %s40 = sphi 0, %s42
      %s43 = sphi 0, %s40
      %s44 = sphi 0, %s43
      %s60 = sphi 0, %s44
      %s64 = sphi 0, %s64
      %s66 = sphi 0, %s64
      %s67 = sphi 0, %s66
      %s81 = sphi 0, %s67
      %s91 = sphi 0, %s93
      %s94 = sphi 0, %s91
      %s95 = sphi 0, %s94
      %s111 = sphi 0, %s95
      %s123 = sphi 0, %s125
      %s126 = sphi 0, %s123
      %s127 = sphi 0, %s126
      %s143 = sphi 0, %s127
      %s157 = sphi 0, %s159
      %s160 = sphi 0, %s157
      %s161 = sphi 0, %s160
      %s177 = sphi 0, %s161
      %s183 = sphi 0, %s185
      %s186 = sphi 0, %s183
      %s187 = sphi 0, %s186
      %s203 = sphi 0, %s187
    $region4: #{fwd.1} parent=1 // loop_header_branch
      %21 = sbr.rel (%p19) target = $region8
    $region5: #{fwd.1} parent=1 // loop_body
      %s23 = ssub.s32 %s18, 1
      %s24 = ssub.s32 %s18, 2
      %s31 = sadd.s32 1, %s26
      %p32 = scmp.ge.s32.totalorder %s31, 2
      %s33 = scalar_select %p32, 0, %s31
      %s34 = sadd.s32 1, %s25
      %s35 = scalar_select %p32, %s34, %s25
      %p36 = scmp.ge.s32.totalorder %s35, 2
      %s37 = scalar_select %p36, 0, %s35
      %s38 = ssub.s32 %s25, %s37
      %p39 = scmp.eq.s32.totalorder %s38, 0
      %s41 = sadd.s32 %s40, 1
      %s42 = scalar_select %p39, %s40, %s41
      %p45 = pneg %p39
      %p46 = scmp.eq.s32.totalorder %s18, 3
      %p47 = por %p45, %p46
      %p48 = scmp.ne.s32.totalorder %s40, %s43
      %p49 = scmp.eq.s32.totalorder %s18, 0
      %p50 = por %p48, %p49
      %p51 = scmp.ne.s32.totalorder %s40, %s43
      %p52 = scmp.eq.s32.totalorder %s23, 3
      %p53 = por %p51, %p52
      %p54 = scmp.ne.s32.totalorder %s43, %s44
      %p55 = scmp.eq.s32.totalorder %s23, 0
      %p56 = por %p54, %p55
      %p57 = scmp.ne.s32.totalorder %s43, %s44
      %p58 = scmp.eq.s32.totalorder %s24, 3
      %p59 = por %p57, %p58
      %p61 = scmp.ne.s32.totalorder %s44, %s60
      %p62 = scmp.eq.s32.totalorder %s24, 0
      %p63 = por %p61, %p62
      %s65 = sadd.s32 %s64, 1
      %p68 = scmp.eq.s32.totalorder %s18, 3
      %p69 = scmp.ne.s32.totalorder %s64, %s66
      %p70 = scmp.eq.s32.totalorder %s18, 0
      %p71 = por %p69, %p70
      %p72 = scmp.ne.s32.totalorder %s64, %s66
      %p73 = scmp.eq.s32.totalorder %s23, 3
      %p74 = por %p72, %p73
      %p75 = scmp.ne.s32.totalorder %s66, %s67
      %p76 = scmp.eq.s32.totalorder %s23, 0
      %p77 = por %p75, %p76
      %p78 = scmp.ne.s32.totalorder %s66, %s67
      %p79 = scmp.eq.s32.totalorder %s24, 3
      %p80 = por %p78, %p79
      %p82 = scmp.ne.s32.totalorder %s67, %s81
      %p83 = scmp.eq.s32.totalorder %s24, 0
      %p84 = por %p82, %p83
      %p85 = scmp.lt.s32.totalorder %s26, 0
      %s86 = scalar_select %p85, %s26, 0
      %p87 = scmp.lt.s32.totalorder %s33, 0
      %s88 = scalar_select %p87, %s33, 0
      %s89 = ssub.s32 %s86, %s88
      %p90 = scmp.eq.s32.totalorder %s89, 0
      %s92 = sadd.s32 %s91, 1
      %s93 = scalar_select %p90, %s91, %s92
      %p96 = pneg %p90
      %p97 = scmp.eq.s32.totalorder %s18, 3
      %p98 = por %p96, %p97
      %p99 = scmp.ne.s32.totalorder %s91, %s94
      %p100 = scmp.eq.s32.totalorder %s18, 0
      %p101 = por %p99, %p100
      %p102 = scmp.ne.s32.totalorder %s91, %s94
      %p103 = scmp.eq.s32.totalorder %s23, 3
      %p104 = por %p102, %p103
      %p105 = scmp.ne.s32.totalorder %s94, %s95
      %p106 = scmp.eq.s32.totalorder %s23, 0
      %p107 = por %p105, %p106
      %p108 = scmp.ne.s32.totalorder %s94, %s95
      %p109 = scmp.eq.s32.totalorder %s24, 3
      %p110 = por %p108, %p109
      %p112 = scmp.ne.s32.totalorder %s95, %s111
      %p113 = scmp.eq.s32.totalorder %s24, 0
      %p114 = por %p112, %p113
      %s115 = ssub.s32 %s26, 1
      %p116 = scmp.gt.s32.totalorder %s115, 0
      %s117 = scalar_select %p116, %s115, 0
      %s118 = ssub.s32 %s33, 1
      %p119 = scmp.gt.s32.totalorder %s118, 0
      %s120 = scalar_select %p119, %s118, 0
      %s121 = ssub.s32 %s117, %s120
      %p122 = scmp.eq.s32.totalorder %s121, 0
      %s124 = sadd.s32 %s123, 1
      %s125 = scalar_select %p122, %s123, %s124
      %p128 = pneg %p122
      %p129 = scmp.eq.s32.totalorder %s18, 3
      %p130 = por %p128, %p129
      %p131 = scmp.ne.s32.totalorder %s123, %s126
      %p132 = scmp.eq.s32.totalorder %s18, 0
      %p133 = por %p131, %p132
      %p134 = scmp.ne.s32.totalorder %s123, %s126
      %p135 = scmp.eq.s32.totalorder %s23, 3
      %p136 = por %p134, %p135
      %p137 = scmp.ne.s32.totalorder %s126, %s127
      %p138 = scmp.eq.s32.totalorder %s23, 0
      %p139 = por %p137, %p138
      %p140 = scmp.ne.s32.totalorder %s126, %s127
      %p141 = scmp.eq.s32.totalorder %s24, 3
      %p142 = por %p140, %p141
      %p144 = scmp.ne.s32.totalorder %s127, %s143
      %p145 = scmp.eq.s32.totalorder %s24, 0
      %p146 = por %p144, %p145
      %s147 = ssub.s32 %s26, 1
      %p148 = scmp.gt.s32.totalorder %s147, 0
      %s149 = scalar_select %p148, %s147, 0
      %s150 = ssub.s32 %s33, 1
      %p151 = scmp.gt.s32.totalorder %s150, 0
      %s152 = scalar_select %p151, %s150, 0
      %s153 = ssub.s32 %s25, %s37
      %s154 = ssub.s32 %s149, %s152
      %s155 = sor.u32 %s153, %s154
      %p156 = scmp.eq.s32.totalorder %s155, 0
      %s158 = sadd.s32 %s157, 1
      %s159 = scalar_select %p156, %s157, %s158
      %p162 = pneg %p156
      %p163 = scmp.eq.s32.totalorder %s18, 3
      %p164 = por %p162, %p163
      %p165 = scmp.ne.s32.totalorder %s157, %s160
      %p166 = scmp.eq.s32.totalorder %s18, 0
      %p167 = por %p165, %p166
      %p168 = scmp.ne.s32.totalorder %s157, %s160
      %p169 = scmp.eq.s32.totalorder %s23, 3
      %p170 = por %p168, %p169
      %p171 = scmp.ne.s32.totalorder %s160, %s161
      %p172 = scmp.eq.s32.totalorder %s23, 0
      %p173 = por %p171, %p172
      %p174 = scmp.ne.s32.totalorder %s160, %s161
      %p175 = scmp.eq.s32.totalorder %s24, 3
      %p176 = por %p174, %p175
      %p178 = scmp.ne.s32.totalorder %s161, %s177
      %p179 = scmp.eq.s32.totalorder %s24, 0
      %p180 = por %p178, %p179
      %s181 = ssub.s32 %s25, %s37
      %p182 = scmp.eq.s32.totalorder %s181, 0
      %s184 = sadd.s32 %s183, 1
      %s185 = scalar_select %p182, %s183, %s184
      %p188 = pneg %p182
      %p189 = scmp.eq.s32.totalorder %s18, 3
      %p190 = por %p188, %p189
      %p191 = scmp.ne.s32.totalorder %s183, %s186
      %p192 = scmp.eq.s32.totalorder %s18, 0
      %p193 = por %p191, %p192
      %p194 = scmp.ne.s32.totalorder %s183, %s186
      %p195 = scmp.eq.s32.totalorder %s23, 3
      %p196 = por %p194, %p195
      %p197 = scmp.ne.s32.totalorder %s186, %s187
      %p198 = scmp.eq.s32.totalorder %s23, 0
      %p199 = por %p197, %p198
      %p200 = scmp.ne.s32.totalorder %s186, %s187
      %p201 = scmp.eq.s32.totalorder %s24, 3
      %p202 = por %p200, %p201
      %p204 = scmp.ne.s32.totalorder %s187, %s203
      %p205 = scmp.eq.s32.totalorder %s24, 0
      %p206 = por %p204, %p205
      %p207 = scmp.le.s32.totalorder 1, %s18
      %p208 = scmp.lt.s32.totalorder %s18, 5
      %p209 = pnand %p207, %p208
      %p210 = pneg %p209
      // Predicated region
      $region9: #{fwd.1} parent=5 // pred_check
        _
      $region10: #{fwd.1} parent=5 // pred_check_branch
        %212 = sbr.rel (%p209) target = $region12
      $region11: #{fwd.1} parent=5 // pred_region
        %s213 = ssub.s32 %s18, 1
        // Predicated region
        $region13: #{fwd.1} parent=11 // pred_check
          %p214 = pneg %p77
        $region14: #{fwd.1} parent=11 // pred_check_branch
          %216 = sbr.rel (%p214) target = $region16
        $region15: #{fwd.1} parent=11 // pred_region
          _
        $region16: #{fwd.1} parent=11 // pred_fallthru
          _
      $region12: #{fwd.1} parent=5 // pred_fallthru
        _
      %p217 = scmp.lt.s32.totalorder %s18, 4
      // Predicated region
      $region17: #{fwd.1} parent=5 // pred_check
        %p218 = pneg %p217
      $region18: #{fwd.1} parent=5 // pred_check_branch
        %220 = sbr.rel (%p218) target = $region20
      $region19: #{fwd.1} parent=5 // pred_region
        // Predicated region
        $region21: #{fwd.1} parent=19 // pred_check
          %p221 = pneg %p50
        $region22: #{fwd.1} parent=19 // pred_check_branch
          %223 = sbr.rel (%p221) target = $region24
        $region23: #{fwd.1} parent=19 // pred_region
          %s224 = smul.u32 2, %s25
          %p225 = scmp.lt.s32.totalorder %s224, 3
          %s226 = scalar_select %p225, %s224, 3
          %s227 = smul.addr %s226, 8
          %s228 = scalar_lea.vmem %s0, %s227
          %s229 = smul.u32 2, %s25
        $region24: #{fwd.1} parent=19 // pred_fallthru
          _
        // Predicated region
        $region25: #{fwd.1} parent=19 // pred_check
          %p230 = pneg %p101
        $region26: #{fwd.1} parent=19 // pred_check_branch
          %232 = sbr.rel (%p230) target = $region28
        $region27: #{fwd.1} parent=19 // pred_region
          %p233 = scmp.lt.s32.totalorder %s26, 0
          %s234 = scalar_select %p233, %s26, 0
          %s235 = smul.u32 3, %s234
          %p236 = scmp.lt.s32.totalorder %s235, 2
          %s237 = scalar_select %p236, %s235, 2
          %s238 = smul.addr %s237, 8
          %s239 = scalar_lea.vmem %s2, %s238
          %p240 = scmp.lt.s32.totalorder %s26, 0
          %s241 = scalar_select %p240, %s26, 0
          %s242 = smul.u32 3, %s241
        $region28: #{fwd.1} parent=19 // pred_fallthru
          _
        // Predicated region
        $region29: #{fwd.1} parent=19 // pred_check
          %p243 = pneg %p133
        $region30: #{fwd.1} parent=19 // pred_check_branch
          %245 = sbr.rel (%p243) target = $region32
        $region31: #{fwd.1} parent=19 // pred_region
          %s246 = ssub.s32 %s26, 1
          %p247 = scmp.gt.s32.totalorder %s246, 0
          %s248 = scalar_select %p247, %s246, 0
          %s249 = smul.u32 48, %s248
          %p250 = scmp.lt.s32.totalorder %s249, 47
          %s251 = scalar_select %p250, %s249, 47
          %s252 = smul.addr %s251, 8
          %s253 = scalar_lea.vmem %s3, %s252
          %s254 = ssub.s32 %s26, 1
          %p255 = scmp.gt.s32.totalorder %s254, 0
          %s256 = scalar_select %p255, %s254, 0
          %s257 = smul.u32 48, %s256
        $region32: #{fwd.1} parent=19 // pred_fallthru
          _
      $region20: #{fwd.1} parent=5 // pred_fallthru
        _
      %p258 = scmp.le.s32.totalorder 1, %s18
      %p259 = scmp.lt.s32.totalorder %s18, 5
      %p260 = pnand %p258, %p259
      %p261 = pneg %p260
      // Predicated region
      $region33: #{fwd.1} parent=5 // pred_check
        _
      $region34: #{fwd.1} parent=5 // pred_check_branch
        %263 = sbr.rel (%p260) target = $region36
      $region35: #{fwd.1} parent=5 // pred_region
        %s264 = ssub.s32 %s18, 1
        %s265 = smul.u32 2, %s27
        %p266 = scmp.lt.s32.totalorder %s265, 3
        %s267 = scalar_select %p266, %s265, 3
        %s268 = smul.addr %s267, 8
        %s269 = scalar_lea.vmem %s0, %s268
        %p270 = pneg %p56
        %p271 = pneg %p53
        %p272 = pneg %p77
        %p273 = pneg %p74
        %p274 = scmp.lt.s32.totalorder %s28, 0
        %s275 = scalar_select %p274, %s28, 0
        %s276 = smul.u32 3, %s275
        %p277 = scmp.lt.s32.totalorder %s276, 2
        %s278 = scalar_select %p277, %s276, 2
        %s279 = smul.addr %s278, 8
        %s280 = scalar_lea.vmem %s2, %s279
        %p281 = pneg %p107
        %p282 = pneg %p104
        %s283 = ssub.s32 %s28, 1
        %p284 = scmp.gt.s32.totalorder %s283, 0
        %s285 = scalar_select %p284, %s283, 0
        %s286 = smul.u32 48, %s285
        %p287 = scmp.lt.s32.totalorder %s286, 47
        %s288 = scalar_select %p287, %s286, 47
        %s289 = smul.addr %s288, 8
        %s290 = scalar_lea.vmem %s3, %s289
        %p291 = pneg %p139
        %p292 = pneg %p136
        %p293 = pneg %p173
        %p294 = pneg %p170
        %s295 = sand.u32 %s160, 1
        %s296 = scalar_lea.sflag [#allocation5], %s295
        %s297 = sand.u32 %s160, 1
        %s298 = smul.addr %s297, 48
        %s299 = scalar_lea.vmem [#allocation4], %s298
        %p300 = pneg %p199
        %p301 = pneg %p196
        %s302 = sand.u32 %s186, 1
        %s303 = scalar_lea.sflag [#allocation7], %s302
        %s304 = sand.u32 %s186, 1
        %s305 = smul.addr %s304, 16
        %s306 = scalar_lea.vmem [#allocation6], %s305
        %s307 = smul.u32 2, %s27
        %p308 = scmp.lt.s32.totalorder %s307, 3
        %s309 = scalar_select %p308, %s307, 3
        %s310 = smul.addr %s309, 8
        %s311 = scalar_lea.vmem %s0, %s310
        %s312 = smul.u32 2, %s27
        %p313 = scmp.lt.s32.totalorder %s28, 0
        %s314 = scalar_select %p313, %s28, 0
        %s315 = smul.u32 3, %s314
        %p316 = scmp.lt.s32.totalorder %s315, 2
        %s317 = scalar_select %p316, %s315, 2
        %s318 = smul.addr %s317, 8
        %s319 = scalar_lea.vmem %s2, %s318
        %p320 = scmp.lt.s32.totalorder %s28, 0
        %s321 = scalar_select %p320, %s28, 0
        %s322 = smul.u32 3, %s321
        %s323 = ssub.s32 %s28, 1
        %p324 = scmp.gt.s32.totalorder %s323, 0
        %s325 = scalar_select %p324, %s323, 0
        %s326 = smul.u32 48, %s325
        %p327 = scmp.lt.s32.totalorder %s326, 47
        %s328 = scalar_select %p327, %s326, 47
        %s329 = smul.addr %s328, 8
        %s330 = scalar_lea.vmem %s3, %s329
        %s331 = ssub.s32 %s28, 1
        %p332 = scmp.gt.s32.totalorder %s331, 0
        %s333 = scalar_select %p332, %s331, 0
        %s334 = smul.u32 48, %s333
        %s335 = ssub.s32 %s28, 1
        %p336 = scmp.gt.s32.totalorder %s335, 0
        %s337 = scalar_select %p336, %s335, 0
        %s338 = smul.u32 2, %s27
        %s339 = smul.u32 3, %s337
        %s340 = smul.u32 2, %s27
        %p341 = scmp.lt.s32.totalorder %s28, 1
        // Predicated region
        $region37: #{fwd.1} parent=35 // pred_check
          %p342 = pneg %p341
        $region38: #{fwd.1} parent=35 // pred_check_branch
          %344 = sbr.rel (%p342) target = $region40
        $region39: #{fwd.1} parent=35 // pred_region
          %v345 = vld [vmem:[%s311] sm:$0xff]
          %v346 = vld [vmem:[%s311 + $0x8] sm:$0xff]
          %v347 = vld [vmem:[%s1] sm:$0x1]
          %v349 = vlaneseq
          %v350 = vshrl.u32 %v349, 7
          %v351 = vsub.s32 0, %v350
          %v352 = vrot.slane %v347, %v351
          %v354 = vsub.f32 %v345, %v352
          %v355 = vsub.f32 %v346, %v352
          %v356 = vld [vmem:[%s319] sm:$0xff]
          %v357 = vld [vmem:[%s319 + $0x8] sm:$0xff]
          %v358 = vld [vmem:[%s319 + $0x10] sm:$0xff]
          %v359 = vld [vmem:[%s319 + $0x18] sm:$0xff]
          %v360 = vld [vmem:[%s319 + $0x20] sm:$0xff]
          %v361 = vld [vmem:[%s319 + $0x28] sm:$0xff]
          %v362 = vld [vmem:[%s319 + $0x30] sm:$0xff]
          %v363 = vld [vmem:[%s319 + $0x38] sm:$0xff]
          %v364 = vld [vmem:[%s319 + $0x40] sm:$0xff]
          %v365 = vld [vmem:[%s319 + $0x48] sm:$0xff]
          %v366 = vld [vmem:[%s319 + $0x50] sm:$0xff]
          %v367 = vld [vmem:[%s319 + $0x58] sm:$0xff]
          %v368 = vld [vmem:[%s319 + $0x60] sm:$0xff]
          %v369 = vld [vmem:[%s319 + $0x68] sm:$0xff]
          %v370 = vld [vmem:[%s319 + $0x70] sm:$0xff]
          %v371 = vld [vmem:[%s319 + $0x78] sm:$0xff]
          %v372 = vld [vmem:[%s319 + $0x80] sm:$0xff]
          %v373 = vld [vmem:[%s319 + $0x88] sm:$0xff]
          %v374 = vld [vmem:[%s319 + $0x90] sm:$0xff]
          %v375 = vld [vmem:[%s319 + $0x98] sm:$0xff]
          %v376 = vld [vmem:[%s319 + $0xa0] sm:$0xff]
          %v377 = vld [vmem:[%s319 + $0xa8] sm:$0xff]
          %v378 = vld [vmem:[%s319 + $0xb0] sm:$0xff]
          %v379 = vld [vmem:[%s319 + $0xb8] sm:$0xff]
          %v380 = vld [vmem:[%s319 + $0xc0] sm:$0xff]
          %v381 = vld [vmem:[%s319 + $0xc8] sm:$0xff]
          %v382 = vld [vmem:[%s319 + $0xd0] sm:$0xff]
          %v383 = vld [vmem:[%s319 + $0xd8] sm:$0xff]
          %v384 = vld [vmem:[%s319 + $0xe0] sm:$0xff]
          %v385 = vld [vmem:[%s319 + $0xe8] sm:$0xff]
          %v386 = vld [vmem:[%s319 + $0xf0] sm:$0xff]
          %v387 = vld [vmem:[%s319 + $0xf8] sm:$0xff]
          %v388 = vld [vmem:[%s319 + $0x100] sm:$0xff]
          %v389 = vld [vmem:[%s319 + $0x108] sm:$0xff]
          %v390 = vld [vmem:[%s319 + $0x110] sm:$0xff]
          %v391 = vld [vmem:[%s319 + $0x118] sm:$0xff]
          %v392 = vld [vmem:[%s319 + $0x120] sm:$0xff]
          %v393 = vld [vmem:[%s319 + $0x128] sm:$0xff]
          %v394 = vld [vmem:[%s319 + $0x130] sm:$0xff]
          %v395 = vld [vmem:[%s319 + $0x138] sm:$0xff]
          %v396 = vld [vmem:[%s319 + $0x140] sm:$0xff]
          %v397 = vld [vmem:[%s319 + $0x148] sm:$0xff]
          %v398 = vld [vmem:[%s319 + $0x150] sm:$0xff]
          %v399 = vld [vmem:[%s319 + $0x158] sm:$0xff]
          %v400 = vld [vmem:[%s319 + $0x160] sm:$0xff]
          %v401 = vld [vmem:[%s319 + $0x168] sm:$0xff]
          %v402 = vld [vmem:[%s319 + $0x170] sm:$0xff]
          %v403 = vld [vmem:[%s319 + $0x178] sm:$0xff]
          %404 = vmatprep.subr.mxu0 %v402
          %405 = vmatpush1.msra.mxu0 %v401
          %406 = vmatprep.subr.mxu0 %v399
          %407 = vmatpush1.msra.mxu0 %v398
          %408 = vmatprep.subr.mxu0 %v396
          %409 = vmatpush1.msra.mxu0 %v395
          %410 = vmatprep.subr.mxu0 %v393
          %411 = vmatpush1.msra.mxu0 %v392
          %412 = vmatprep.subr.mxu0 %v390
          %413 = vmatpush1.msra.mxu0 %v389
          %414 = vmatprep.subr.mxu0 %v387
          %415 = vmatpush1.msra.mxu0 %v386
          %416 = vmatprep.subr.mxu0 %v384
          %417 = vmatpush1.msra.mxu0 %v383
          %418 = vmatprep.subr.mxu0 %v381
          %419 = vmatpush1.msra.mxu0 %v380
          %420 = vmatprep.subr.mxu0 %v378
          %421 = vmatpush1.msra.mxu0 %v377
          %422 = vmatprep.subr.mxu0 %v375
          %423 = vmatpush1.msra.mxu0 %v374
          %424 = vmatprep.subr.mxu0 %v372
          %425 = vmatpush1.msra.mxu0 %v371
          %426 = vmatprep.subr.mxu0 %v369
          %427 = vmatpush1.msra.mxu0 %v368
          %428 = vmatprep.subr.mxu0 %v366
          %429 = vmatpush1.msra.mxu0 %v365
          %430 = vmatprep.subr.mxu0 %v363
          %431 = vmatpush1.msra.mxu0 %v362
          %432 = vmatprep.subr.mxu0 %v360
          %433 = vmatpush1.msra.mxu0 %v359
          %434 = vmatprep.subr.mxu0 %v357
          %435 = vmatpush1.msra.mxu0 %v356
          %436 = vmatprep.subr.mxu0 0.0
          %437 = vmatpush2.msra.mxu0 0.0
          %438 = vmatprep.subr.mxu0 0.0
          %439 = vmatpush2.msra.mxu0 0.0
          %440 = vmatprep.subr.mxu0 0.0
          %441 = vmatpush2.msra.mxu0 0.0
          %442 = vmatprep.subr.mxu0 0.0
          %443 = vmatpush2.msra.mxu0 0.0
          %444 = vmatprep.subr.mxu0 0.0
          %445 = vmatpush2.msra.mxu0 0.0
          %446 = vmatprep.subr.mxu0 0.0
          %447 = vmatpush2.msra.mxu0 0.0
          %448 = vmatprep.subr.mxu0 0.0
          %449 = vmatpush2.msra.mxu0 0.0
          %450 = vmatprep.subr.mxu0 0.0
          %451 = vmatpush2.msra.mxu0 0.0
          %452 = vmatprep.subr.mxu0 0.0
          %453 = vmatpush2.msra.mxu0 0.0
          %454 = vmatprep.subr.mxu0 0.0
          %455 = vmatpush2.msra.mxu0 0.0
          %456 = vmatprep.subr.mxu0 0.0
          %457 = vmatpush2.msra.mxu0 0.0
          %458 = vmatprep.subr.mxu0 0.0
          %459 = vmatpush2.msra.mxu0 0.0
          %460 = vmatprep.subr.mxu0 0.0
          %461 = vmatpush2.msra.mxu0 0.0
          %462 = vmatprep.subr.mxu0 0.0
          %463 = vmatpush2.msra.mxu0 0.0
          %464 = vmatprep.subr.mxu0 0.0
          %465 = vmatpush2.msra.mxu0 0.0
          %466 = vmatprep.subr.mxu0 0.0
          %467 = vmatpush2.msra.mxu0 0.0
          %468 = vmatprep.mubr.f32.mxu0 0.0
          %469 = vmatmul.mubr.f32.gmra.mxu0 %v354
          %v470 = vpop.f32.mrf.mxu0
          %v471 = vadd.f32 0.0, %v470
          %v472 = vpop.f32.mrf.mxu0
          %v473 = vadd.f32 0.0, %v472
          %474 = vmatprep.mubr.f32.mxu0 0.0
          %475 = vmatmul.mubr.f32.gmra.mxu0 %v355
          %v476 = vpop.f32.mrf.mxu0
          %v477 = vadd.f32 0.0, %v476
          %v478 = vpop.f32.mrf.mxu0
          %v479 = vadd.f32 0.0, %v478
          %480 = vdwg.mxu0
          %481 = vmatprep.subr.mxu0 0.0
          %482 = vmatpush1.msra.mxu0 %v403
          %483 = vmatprep.subr.mxu0 0.0
          %484 = vmatpush1.msra.mxu0 %v400
          %485 = vmatprep.subr.mxu0 0.0
          %486 = vmatpush1.msra.mxu0 %v397
          %487 = vmatprep.subr.mxu0 0.0
          %488 = vmatpush1.msra.mxu0 %v394
          %489 = vmatprep.subr.mxu0 0.0
          %490 = vmatpush1.msra.mxu0 %v391
          %491 = vmatprep.subr.mxu0 0.0
          %492 = vmatpush1.msra.mxu0 %v388
          %493 = vmatprep.subr.mxu0 0.0
          %494 = vmatpush1.msra.mxu0 %v385
          %495 = vmatprep.subr.mxu0 0.0
          %496 = vmatpush1.msra.mxu0 %v382
          %497 = vmatprep.subr.mxu0 0.0
          %498 = vmatpush1.msra.mxu0 %v379
          %499 = vmatprep.subr.mxu0 0.0
          %500 = vmatpush1.msra.mxu0 %v376
          %501 = vmatprep.subr.mxu0 0.0
          %502 = vmatpush1.msra.mxu0 %v373
          %503 = vmatprep.subr.mxu0 0.0
          %504 = vmatpush1.msra.mxu0 %v370
          %505 = vmatprep.subr.mxu0 0.0
          %506 = vmatpush1.msra.mxu0 %v367
          %507 = vmatprep.subr.mxu0 0.0
          %508 = vmatpush1.msra.mxu0 %v364
          %509 = vmatprep.subr.mxu0 0.0
          %510 = vmatpush1.msra.mxu0 %v361
          %511 = vmatprep.subr.mxu0 0.0
          %512 = vmatpush1.msra.mxu0 %v358
          %513 = vmatprep.subr.mxu0 0.0
          %514 = vmatpush2.msra.mxu0 0.0
          %515 = vmatprep.subr.mxu0 0.0
          %516 = vmatpush2.msra.mxu0 0.0
          %517 = vmatprep.subr.mxu0 0.0
          %518 = vmatpush2.msra.mxu0 0.0
          %519 = vmatprep.subr.mxu0 0.0
          %520 = vmatpush2.msra.mxu0 0.0
          %521 = vmatprep.subr.mxu0 0.0
          %522 = vmatpush2.msra.mxu0 0.0
          %523 = vmatprep.subr.mxu0 0.0
          %524 = vmatpush2.msra.mxu0 0.0
          %525 = vmatprep.subr.mxu0 0.0
          %526 = vmatpush2.msra.mxu0 0.0
          %527 = vmatprep.subr.mxu0 0.0
          %528 = vmatpush2.msra.mxu0 0.0
          %529 = vmatprep.subr.mxu0 0.0
          %530 = vmatpush2.msra.mxu0 0.0
          %531 = vmatprep.subr.mxu0 0.0
          %532 = vmatpush2.msra.mxu0 0.0
          %533 = vmatprep.subr.mxu0 0.0
          %534 = vmatpush2.msra.mxu0 0.0
          %535 = vmatprep.subr.mxu0 0.0
          %536 = vmatpush2.msra.mxu0 0.0
          %537 = vmatprep.subr.mxu0 0.0
          %538 = vmatpush2.msra.mxu0 0.0
          %539 = vmatprep.subr.mxu0 0.0
          %540 = vmatpush2.msra.mxu0 0.0
          %541 = vmatprep.subr.mxu0 0.0
          %542 = vmatpush2.msra.mxu0 0.0
          %543 = vmatprep.subr.mxu0 0.0
          %544 = vmatpush2.msra.mxu0 0.0
          %545 = vmatprep.mubr.f32.mxu0 0.0
          %546 = vmatmul.mubr.f32.gmra.mxu0 %v354
          %v547 = vpop.f32.mrf.mxu0
          %v548 = vadd.f32 0.0, %v547
          %v549 = vpop.f32.mrf.mxu0
          %550 = vmatprep.mubr.f32.mxu0 0.0
          %551 = vmatmul.mubr.f32.gmra.mxu0 %v355
          %v552 = vpop.f32.mrf.mxu0
          %v553 = vadd.f32 0.0, %v552
          %v554 = vpop.f32.mrf.mxu0
          %555 = vdwg.mxu0
          %s556 = smul.u32 %s28, 384
          %v557 = vmax.f32 %v471, 0.0
          %v558 = vmax.f32 %v473, 0.0
          %v559 = vmax.f32 %v548, 0.0
          %v560 = vmax.f32 %v477, 0.0
          %v561 = vmax.f32 %v479, 0.0
          %v562 = vmax.f32 %v553, 0.0
          %s563 = sshra.s32 %s556, 7
          %s564 = sand.u32 %s556, 127
          %s565 = smul.addr %s563, 8
          %s566 = scalar_lea.vmem [#allocation2], %s565
          %567 = vst [vmem:[%s566] sm:$0xff] %v557
          %568 = vst [vmem:[%s566 + $0x8] sm:$0xff] %v558
          %569 = vst [vmem:[%s566 + $0x10] sm:$0xff] %v559
          %570 = vst [vmem:[%s566 + $0x18] sm:$0xff] %v560
          %571 = vst [vmem:[%s566 + $0x20] sm:$0xff] %v561
          %572 = vst [vmem:[%s566 + $0x28] sm:$0xff] %v562
        $region40: #{fwd.1} parent=35 // pred_fallthru
          _
        %p573 = scmp.eq.s32.totalorder %s28, 1
        // Predicated region
        $region41: #{fwd.1} parent=35 // pred_check
          %p574 = pneg %p573
        $region42: #{fwd.1} parent=35 // pred_check_branch
          %576 = sbr.rel (%p574) target = $region44
        $region43: #{fwd.1} parent=35 // pred_region
          %v577 = vld [vmem:[#allocation2] sm:$0xff]
          %v578 = vld [vmem:[#allocation2 + $0x8] sm:$0xff]
          %v579 = vld [vmem:[#allocation2 + $0x10] sm:$0xff]
          %v580 = vld [vmem:[#allocation2 + $0x18] sm:$0xff]
          %v581 = vld [vmem:[#allocation2 + $0x20] sm:$0xff]
          %v582 = vld [vmem:[#allocation2 + $0x28] sm:$0xff]
          %v583 = vmax.f32 %v577, %v579
          %v584 = vmax.f32 %v583, %v578
          %585 = vmax.xlane.f32.xlu0 %v584
          %v586 = vpop.xlane.xlu0 %585
          %v587 = vmax.f32 %v580, %v582
          %v588 = vmax.f32 %v587, %v581
          %589 = vmax.xlane.f32.xlu0 %v588
          %v590 = vpop.xlane.xlu0 %589
          %vm591 = vcmp.eq.f32.partialorder %v577, %v586
          %vm592 = vcmp.eq.f32.partialorder %v578, %v586
          %vm593 = vcmp.eq.f32.partialorder %v579, %v586
          %vm594 = vcmp.eq.f32.partialorder %v580, %v590
          %vm595 = vcmp.eq.f32.partialorder %v581, %v590
          %vm596 = vcmp.eq.f32.partialorder %v582, %v590
          %vm597 = vcmp.ge.f32.partialorder %v586, 0.0
          %vm598 = vcmp.ge.f32.partialorder %v590, 0.0
          %v599 = vsel %vm597, 1, 0
          %v600 = vsel %vm598, 1, 0
          %vm601 = vcmp.eq.s32.totalorder %v599, 1
          %vm602 = vcmp.eq.s32.totalorder %v600, 1
          %vm603 = vmand %vm591, %vm601
          %vm604 = vmand %vm592, %vm601
          %vm605 = vmand %vm593, %vm601
          %vm606 = vmand %vm594, %vm602
          %vm607 = vmand %vm595, %vm602
          %vm608 = vmand %vm596, %vm602
          %v609 = vsel %vm603, -1.0, %v577
          %v610 = vsel %vm604, -1.0, %v578
          %v611 = vsel %vm605, -1.0, %v579
          %v612 = vsel %vm606, -1.0, %v580
          %v613 = vsel %vm607, -1.0, %v581
          %v614 = vsel %vm608, -1.0, %v582
          %v615 = vmax.f32 %v609, %v611
          %v616 = vmax.f32 %v615, %v610
          %617 = vmax.xlane.f32.xlu0 %v616
          %v618 = vpop.xlane.xlu0 %617
          %v619 = vmax.f32 %v612, %v614
          %v620 = vmax.f32 %v619, %v613
          %621 = vmax.xlane.f32.xlu0 %v620
          %v622 = vpop.xlane.xlu0 %621
          %vm623 = vcmp.eq.f32.partialorder %v609, %v618
          %vm624 = vcmp.eq.f32.partialorder %v610, %v618
          %vm625 = vcmp.eq.f32.partialorder %v611, %v618
          %vm626 = vcmp.eq.f32.partialorder %v612, %v622
          %vm627 = vcmp.eq.f32.partialorder %v613, %v622
          %vm628 = vcmp.eq.f32.partialorder %v614, %v622
          %vm629 = vcmp.ge.f32.partialorder %v618, 0.0
          %vm630 = vcmp.ge.f32.partialorder %v622, 0.0
          %v631 = vsel %vm629, 1, 0
          %v632 = vsel %vm630, 1, 0
          %vm633 = vcmp.eq.s32.totalorder %v631, 1
          %vm634 = vcmp.eq.s32.totalorder %v632, 1
          %vm635 = vmand %vm623, %vm633
          %vm636 = vmand %vm624, %vm633
          %vm637 = vmand %vm625, %vm633
          %vm638 = vmand %vm626, %vm634
          %vm639 = vmand %vm627, %vm634
          %vm640 = vmand %vm628, %vm634
          %v641 = vsel %vm635, -1.0, %v609
          %v642 = vsel %vm636, -1.0, %v610
          %v643 = vsel %vm637, -1.0, %v611
          %v644 = vsel %vm638, -1.0, %v612
          %v645 = vsel %vm639, -1.0, %v613
          %v646 = vsel %vm640, -1.0, %v614
          %v647 = vmax.f32 %v641, %v643
          %v648 = vmax.f32 %v647, %v642
          %649 = vmax.xlane.f32.xlu0 %v648
          %v650 = vpop.xlane.xlu0 %649
          %v651 = vmax.f32 %v644, %v646
          %v652 = vmax.f32 %v651, %v645
          %653 = vmax.xlane.f32.xlu0 %v652
          %v654 = vpop.xlane.xlu0 %653
          %vm655 = vcmp.eq.f32.partialorder %v641, %v650
          %vm656 = vcmp.eq.f32.partialorder %v642, %v650
          %vm657 = vcmp.eq.f32.partialorder %v643, %v650
          %vm658 = vcmp.eq.f32.partialorder %v644, %v654
          %vm659 = vcmp.eq.f32.partialorder %v645, %v654
          %vm660 = vcmp.eq.f32.partialorder %v646, %v654
          %vm661 = vcmp.ge.f32.partialorder %v650, 0.0
          %vm662 = vcmp.ge.f32.partialorder %v654, 0.0
          %v663 = vsel %vm661, 1, 0
          %v664 = vsel %vm662, 1, 0
          %vm665 = vcmp.eq.s32.totalorder %v663, 1
          %vm666 = vcmp.eq.s32.totalorder %v664, 1
          %vm667 = vmand %vm655, %vm665
          %vm668 = vmand %vm656, %vm665
          %vm669 = vmand %vm657, %vm665
          %vm670 = vmand %vm658, %vm666
          %vm671 = vmand %vm659, %vm666
          %vm672 = vmand %vm660, %vm666
          %v673 = vsel %vm667, -1.0, %v641
          %v674 = vsel %vm668, -1.0, %v642
          %v675 = vsel %vm669, -1.0, %v643
          %v676 = vsel %vm670, -1.0, %v644
          %v677 = vsel %vm671, -1.0, %v645
          %v678 = vsel %vm672, -1.0, %v646
          %v679 = vmax.f32 %v673, %v675
          %v680 = vmax.f32 %v679, %v674
          %681 = vmax.xlane.f32.xlu0 %v680
          %v682 = vpop.xlane.xlu0 %681
          %v683 = vmax.f32 %v676, %v678
          %v684 = vmax.f32 %v683, %v677
          %685 = vmax.xlane.f32.xlu0 %v684
          %v686 = vpop.xlane.xlu0 %685
          %vm687 = vcmp.eq.f32.partialorder %v673, %v682
          %vm688 = vcmp.eq.f32.partialorder %v674, %v682
          %vm689 = vcmp.eq.f32.partialorder %v675, %v682
          %vm690 = vcmp.eq.f32.partialorder %v676, %v686
          %vm691 = vcmp.eq.f32.partialorder %v677, %v686
          %vm692 = vcmp.eq.f32.partialorder %v678, %v686
          %vm693 = vcmp.ge.f32.partialorder %v682, 0.0
          %vm694 = vcmp.ge.f32.partialorder %v686, 0.0
          %v695 = vsel %vm693, 1, 0
          %v696 = vsel %vm694, 1, 0
          %vm697 = vcmp.eq.s32.totalorder %v695, 1
          %vm698 = vcmp.eq.s32.totalorder %v696, 1
          %vm699 = vmand %vm687, %vm697
          %vm700 = vmand %vm688, %vm697
          %vm701 = vmand %vm689, %vm697
          %vm702 = vmand %vm690, %vm698
          %vm703 = vmand %vm691, %vm698
          %vm704 = vmand %vm692, %vm698
          %v705 = vsel %vm699, -1.0, %v673
          %v706 = vsel %vm700, -1.0, %v674
          %v707 = vsel %vm701, -1.0, %v675
          %v708 = vsel %vm702, -1.0, %v676
          %v709 = vsel %vm703, -1.0, %v677
          %v710 = vsel %vm704, -1.0, %v678
          %v711 = vmax.f32 %v705, %v707
          %v712 = vmax.f32 %v711, %v706
          %713 = vmax.xlane.f32.xlu0 %v712
          %v714 = vpop.xlane.xlu0 %713
          %v715 = vmax.f32 %v708, %v710
          %v716 = vmax.f32 %v715, %v709
          %717 = vmax.xlane.f32.xlu0 %v716
          %v718 = vpop.xlane.xlu0 %717
          %vm719 = vcmp.eq.f32.partialorder %v705, %v714
          %vm720 = vcmp.eq.f32.partialorder %v706, %v714
          %vm721 = vcmp.eq.f32.partialorder %v707, %v714
          %vm722 = vcmp.eq.f32.partialorder %v708, %v718
          %vm723 = vcmp.eq.f32.partialorder %v709, %v718
          %vm724 = vcmp.eq.f32.partialorder %v710, %v718
          %vm725 = vcmp.ge.f32.partialorder %v714, 0.0
          %vm726 = vcmp.ge.f32.partialorder %v718, 0.0
          %v727 = vsel %vm725, 1, 0
          %v728 = vsel %vm726, 1, 0
          %vm729 = vcmp.eq.s32.totalorder %v727, 1
          %vm730 = vcmp.eq.s32.totalorder %v728, 1
          %vm731 = vmand %vm719, %vm729
          %vm732 = vmand %vm720, %vm729
          %vm733 = vmand %vm721, %vm729
          %vm734 = vmand %vm722, %vm730
          %vm735 = vmand %vm723, %vm730
          %vm736 = vmand %vm724, %vm730
          %v737 = vsel %vm731, -1.0, %v705
          %v738 = vsel %vm732, -1.0, %v706
          %v739 = vsel %vm733, -1.0, %v707
          %v740 = vsel %vm734, -1.0, %v708
          %v741 = vsel %vm735, -1.0, %v709
          %v742 = vsel %vm736, -1.0, %v710
          %v743 = vmax.f32 %v737, %v739
          %v744 = vmax.f32 %v743, %v738
          %745 = vmax.xlane.f32.xlu0 %v744
          %v746 = vpop.xlane.xlu0 %745
          %v747 = vmax.f32 %v740, %v742
          %v748 = vmax.f32 %v747, %v741
          %749 = vmax.xlane.f32.xlu0 %v748
          %v750 = vpop.xlane.xlu0 %749
          %vm751 = vcmp.eq.f32.partialorder %v737, %v746
          %vm752 = vcmp.eq.f32.partialorder %v738, %v746
          %vm753 = vcmp.eq.f32.partialorder %v739, %v746
          %vm754 = vcmp.eq.f32.partialorder %v740, %v750
          %vm755 = vcmp.eq.f32.partialorder %v741, %v750
          %vm756 = vcmp.eq.f32.partialorder %v742, %v750
          %vm757 = vcmp.ge.f32.partialorder %v746, 0.0
          %vm758 = vcmp.ge.f32.partialorder %v750, 0.0
          %v759 = vsel %vm757, 1, 0
          %v760 = vsel %vm758, 1, 0
          %vm761 = vcmp.eq.s32.totalorder %v759, 1
          %vm762 = vcmp.eq.s32.totalorder %v760, 1
          %vm763 = vmand %vm751, %vm761
          %vm764 = vmand %vm752, %vm761
          %vm765 = vmand %vm753, %vm761
          %vm766 = vmand %vm754, %vm762
          %vm767 = vmand %vm755, %vm762
          %vm768 = vmand %vm756, %vm762
          %v769 = vsel %vm763, -1.0, %v737
          %v770 = vsel %vm764, -1.0, %v738
          %v771 = vsel %vm765, -1.0, %v739
          %v772 = vsel %vm766, -1.0, %v740
          %v773 = vsel %vm767, -1.0, %v741
          %v774 = vsel %vm768, -1.0, %v742
          %v775 = vmax.f32 %v769, %v771
          %v776 = vmax.f32 %v775, %v770
          %777 = vmax.xlane.f32.xlu0 %v776
          %v778 = vpop.xlane.xlu0 %777
          %v779 = vmax.f32 %v772, %v774
          %v780 = vmax.f32 %v779, %v773
          %781 = vmax.xlane.f32.xlu0 %v780
          %v782 = vpop.xlane.xlu0 %781
          %vm783 = vcmp.eq.f32.partialorder %v769, %v778
          %vm784 = vcmp.eq.f32.partialorder %v770, %v778
          %vm785 = vcmp.eq.f32.partialorder %v771, %v778
          %vm786 = vcmp.eq.f32.partialorder %v772, %v782
          %vm787 = vcmp.eq.f32.partialorder %v773, %v782
          %vm788 = vcmp.eq.f32.partialorder %v774, %v782
          %vm789 = vcmp.ge.f32.partialorder %v778, 0.0
          %vm790 = vcmp.ge.f32.partialorder %v782, 0.0
          %v791 = vsel %vm789, 1, 0
          %v792 = vsel %vm790, 1, 0
          %vm793 = vcmp.eq.s32.totalorder %v791, 1
          %vm794 = vcmp.eq.s32.totalorder %v792, 1
          %vm795 = vmand %vm783, %vm793
          %vm796 = vmand %vm784, %vm793
          %vm797 = vmand %vm785, %vm793
          %vm798 = vmand %vm786, %vm794
          %vm799 = vmand %vm787, %vm794
          %vm800 = vmand %vm788, %vm794
          %v801 = vsel %vm795, -1.0, %v769
          %v802 = vsel %vm796, -1.0, %v770
          %v803 = vsel %vm797, -1.0, %v771
          %v804 = vsel %vm798, -1.0, %v772
          %v805 = vsel %vm799, -1.0, %v773
          %v806 = vsel %vm800, -1.0, %v774
          %v807 = vmax.f32 %v801, %v803
          %v808 = vmax.f32 %v807, %v802
          %809 = vmax.xlane.f32.xlu0 %v808
          %v810 = vpop.xlane.xlu0 %809
          %v811 = vmax.f32 %v804, %v806
          %v812 = vmax.f32 %v811, %v805
          %813 = vmax.xlane.f32.xlu0 %v812
          %v814 = vpop.xlane.xlu0 %813
          %vm815 = vcmp.eq.f32.partialorder %v801, %v810
          %vm816 = vcmp.eq.f32.partialorder %v802, %v810
          %vm817 = vcmp.eq.f32.partialorder %v803, %v810
          %vm818 = vcmp.eq.f32.partialorder %v804, %v814
          %vm819 = vcmp.eq.f32.partialorder %v805, %v814
          %vm820 = vcmp.eq.f32.partialorder %v806, %v814
          %vm821 = vcmp.ge.f32.partialorder %v810, 0.0
          %vm822 = vcmp.ge.f32.partialorder %v814, 0.0
          %v823 = vsel %vm821, 1, 0
          %v824 = vsel %vm822, 1, 0
          %vm825 = vcmp.eq.s32.totalorder %v823, 1
          %vm826 = vcmp.eq.s32.totalorder %v824, 1
          %vm827 = vmand %vm815, %vm825
          %vm828 = vmand %vm816, %vm825
          %vm829 = vmand %vm817, %vm825
          %vm830 = vmand %vm818, %vm826
          %vm831 = vmand %vm819, %vm826
          %vm832 = vmand %vm820, %vm826
          %v833 = vsel %vm827, -1.0, %v801
          %v834 = vsel %vm828, -1.0, %v802
          %v835 = vsel %vm829, -1.0, %v803
          %v836 = vsel %vm830, -1.0, %v804
          %v837 = vsel %vm831, -1.0, %v805
          %v838 = vsel %vm832, -1.0, %v806
          %vm839 = vcmp.lt.f32.partialorder %v833, 0.0
          %vm840 = vcmp.lt.f32.partialorder %v834, 0.0
          %vm841 = vcmp.lt.f32.partialorder %v835, 0.0
          %vm842 = vcmp.lt.f32.partialorder %v836, 0.0
          %vm843 = vcmp.lt.f32.partialorder %v837, 0.0
          %vm844 = vcmp.lt.f32.partialorder %v838, 0.0
          %v845 = vsel %vm839, %v577, 0.0
          %v846 = vsel %vm840, %v578, 0.0
          %v847 = vsel %vm841, %v579, 0.0
          %v848 = vsel %vm842, %v580, 0.0
          %v849 = vsel %vm843, %v581, 0.0
          %v850 = vsel %vm844, %v582, 0.0
          %851 = vst [vmem:[#allocation2] sm:$0xff] %v845
          %852 = vst [vmem:[#allocation2 + $0x8] sm:$0xff] %v846
          %853 = vst [vmem:[#allocation2 + $0x10] sm:$0xff] %v847
          %854 = vst [vmem:[#allocation2 + $0x18] sm:$0xff] %v848
          %855 = vst [vmem:[#allocation2 + $0x20] sm:$0xff] %v849
          %856 = vst [vmem:[#allocation2 + $0x28] sm:$0xff] %v850
          %857 = vst [vmem:[#allocation3] sm:$0xff] 0.0
          %858 = vst [vmem:[#allocation3 + $0x8] sm:$0xff] 0.0
        $region44: #{fwd.1} parent=35 // pred_fallthru
          _
        %p859 = scmp.ge.s32.totalorder %s28, 1
        // Predicated region
        $region45: #{fwd.1} parent=35 // pred_check
          %p860 = pneg %p859
        $region46: #{fwd.1} parent=35 // pred_check_branch
          %862 = sbr.rel (%p860) target = $region48
        $region47: #{fwd.1} parent=35 // pred_region
          %s863 = ssub.s32 %s28, 1
          %s864 = smul.u32 %s863, 384
          %s865 = sshra.s32 %s864, 7
          %s866 = sand.u32 %s864, 127
          %s867 = smul.addr %s865, 8
          %s868 = scalar_lea.vmem [#allocation2], %s867
          %v869 = vld [vmem:[%s868] sm:$0xff]
          %v870 = vld [vmem:[%s868 + $0x8] sm:$0xff]
          %v871 = vld [vmem:[%s868 + $0x10] sm:$0xff]
          %v872 = vld [vmem:[%s868 + $0x18] sm:$0xff]
          %v873 = vld [vmem:[%s868 + $0x20] sm:$0xff]
          %v874 = vld [vmem:[%s868 + $0x28] sm:$0xff]
          %875 = vst [vmem:[%s299] sm:$0xff] %v869
          %876 = vst [vmem:[%s299 + $0x8] sm:$0xff] %v870
          %877 = vst [vmem:[%s299 + $0x10] sm:$0xff] %v871
          %878 = vst [vmem:[%s299 + $0x18] sm:$0xff] %v872
          %879 = vst [vmem:[%s299 + $0x20] sm:$0xff] %v873
          %880 = vst [vmem:[%s299 + $0x28] sm:$0xff] %v874
          %v881 = vld [vmem:[#allocation3] sm:$0xff]
          %v882 = vld [vmem:[#allocation3 + $0x8] sm:$0xff]
          %v883 = vld [vmem:[%s330] sm:$0xff]
          %v884 = vld [vmem:[%s330 + $0x8] sm:$0xff]
          %v885 = vld [vmem:[%s330 + $0x10] sm:$0xff]
          %v886 = vld [vmem:[%s330 + $0x18] sm:$0xff]
          %v887 = vld [vmem:[%s330 + $0x20] sm:$0xff]
          %v888 = vld [vmem:[%s330 + $0x28] sm:$0xff]
          %v889 = vld [vmem:[%s330 + $0x30] sm:$0xff]
          %v890 = vld [vmem:[%s330 + $0x38] sm:$0xff]
          %v891 = vld [vmem:[%s330 + $0x40] sm:$0xff]
          %v892 = vld [vmem:[%s330 + $0x48] sm:$0xff]
          %v893 = vld [vmem:[%s330 + $0x50] sm:$0xff]
          %v894 = vld [vmem:[%s330 + $0x58] sm:$0xff]
          %v895 = vld [vmem:[%s330 + $0x60] sm:$0xff]
          %v896 = vld [vmem:[%s330 + $0x68] sm:$0xff]
          %v897 = vld [vmem:[%s330 + $0x70] sm:$0xff]
          %v898 = vld [vmem:[%s330 + $0x78] sm:$0xff]
          %v899 = vld [vmem:[%s330 + $0x80] sm:$0xff]
          %v900 = vld [vmem:[%s330 + $0x88] sm:$0xff]
          %v901 = vld [vmem:[%s330 + $0x90] sm:$0xff]
          %v902 = vld [vmem:[%s330 + $0x98] sm:$0xff]
          %v903 = vld [vmem:[%s330 + $0xa0] sm:$0xff]
          %v904 = vld [vmem:[%s330 + $0xa8] sm:$0xff]
          %v905 = vld [vmem:[%s330 + $0xb0] sm:$0xff]
          %v906 = vld [vmem:[%s330 + $0xb8] sm:$0xff]
          %v907 = vld [vmem:[%s330 + $0xc0] sm:$0xff]
          %v908 = vld [vmem:[%s330 + $0xc8] sm:$0xff]
          %v909 = vld [vmem:[%s330 + $0xd0] sm:$0xff]
          %v910 = vld [vmem:[%s330 + $0xd8] sm:$0xff]
          %v911 = vld [vmem:[%s330 + $0xe0] sm:$0xff]
          %v912 = vld [vmem:[%s330 + $0xe8] sm:$0xff]
          %v913 = vld [vmem:[%s330 + $0xf0] sm:$0xff]
          %v914 = vld [vmem:[%s330 + $0xf8] sm:$0xff]
          %v915 = vld [vmem:[%s330 + $0x100] sm:$0xff]
          %v916 = vld [vmem:[%s330 + $0x108] sm:$0xff]
          %v917 = vld [vmem:[%s330 + $0x110] sm:$0xff]
          %v918 = vld [vmem:[%s330 + $0x118] sm:$0xff]
          %v919 = vld [vmem:[%s330 + $0x120] sm:$0xff]
          %v920 = vld [vmem:[%s330 + $0x128] sm:$0xff]
          %v921 = vld [vmem:[%s330 + $0x130] sm:$0xff]
          %v922 = vld [vmem:[%s330 + $0x138] sm:$0xff]
          %v923 = vld [vmem:[%s330 + $0x140] sm:$0xff]
          %v924 = vld [vmem:[%s330 + $0x148] sm:$0xff]
          %v925 = vld [vmem:[%s330 + $0x150] sm:$0xff]
          %v926 = vld [vmem:[%s330 + $0x158] sm:$0xff]
          %v927 = vld [vmem:[%s330 + $0x160] sm:$0xff]
          %v928 = vld [vmem:[%s330 + $0x168] sm:$0xff]
          %v929 = vld [vmem:[%s330 + $0x170] sm:$0xff]
          %v930 = vld [vmem:[%s330 + $0x178] sm:$0xff]
          %931 = vmatprep.subr.mxu0 0.0
          %932 = vmatpush1.msra.mxu0 %v898
          %933 = vmatprep.subr.mxu0 0.0
          %934 = vmatpush1.msra.mxu0 %v897
          %935 = vmatprep.subr.mxu0 0.0
          %936 = vmatpush1.msra.mxu0 %v896
          %937 = vmatprep.subr.mxu0 0.0
          %938 = vmatpush1.msra.mxu0 %v895
          %939 = vmatprep.subr.mxu0 0.0
          %940 = vmatpush1.msra.mxu0 %v894
          %941 = vmatprep.subr.mxu0 0.0
          %942 = vmatpush1.msra.mxu0 %v893
          %943 = vmatprep.subr.mxu0 0.0
          %944 = vmatpush1.msra.mxu0 %v892
          %945 = vmatprep.subr.mxu0 0.0
          %946 = vmatpush1.msra.mxu0 %v891
          %947 = vmatprep.subr.mxu0 0.0
          %948 = vmatpush1.msra.mxu0 %v890
          %949 = vmatprep.subr.mxu0 0.0
          %950 = vmatpush1.msra.mxu0 %v889
          %951 = vmatprep.subr.mxu0 0.0
          %952 = vmatpush1.msra.mxu0 %v888
          %953 = vmatprep.subr.mxu0 0.0
          %954 = vmatpush1.msra.mxu0 %v887
          %955 = vmatprep.subr.mxu0 0.0
          %956 = vmatpush1.msra.mxu0 %v886
          %957 = vmatprep.subr.mxu0 0.0
          %958 = vmatpush1.msra.mxu0 %v885
          %959 = vmatprep.subr.mxu0 0.0
          %960 = vmatpush1.msra.mxu0 %v884
          %961 = vmatprep.subr.mxu0 0.0
          %962 = vmatpush1.msra.mxu0 %v883
          %963 = vmatprep.subr.mxu0 0.0
          %964 = vmatpush2.msra.mxu0 %v914
          %965 = vmatprep.subr.mxu0 0.0
          %966 = vmatpush2.msra.mxu0 %v913
          %967 = vmatprep.subr.mxu0 0.0
          %968 = vmatpush2.msra.mxu0 %v912
          %969 = vmatprep.subr.mxu0 0.0
          %970 = vmatpush2.msra.mxu0 %v911
          %971 = vmatprep.subr.mxu0 0.0
          %972 = vmatpush2.msra.mxu0 %v910
          %973 = vmatprep.subr.mxu0 0.0
          %974 = vmatpush2.msra.mxu0 %v909
          %975 = vmatprep.subr.mxu0 0.0
          %976 = vmatpush2.msra.mxu0 %v908
          %977 = vmatprep.subr.mxu0 0.0
          %978 = vmatpush2.msra.mxu0 %v907
          %979 = vmatprep.subr.mxu0 0.0
          %980 = vmatpush2.msra.mxu0 %v906
          %981 = vmatprep.subr.mxu0 0.0
          %982 = vmatpush2.msra.mxu0 %v905
          %983 = vmatprep.subr.mxu0 0.0
          %984 = vmatpush2.msra.mxu0 %v904
          %985 = vmatprep.subr.mxu0 0.0
          %986 = vmatpush2.msra.mxu0 %v903
          %987 = vmatprep.subr.mxu0 0.0
          %988 = vmatpush2.msra.mxu0 %v902
          %989 = vmatprep.subr.mxu0 0.0
          %990 = vmatpush2.msra.mxu0 %v901
          %991 = vmatprep.subr.mxu0 0.0
          %992 = vmatpush2.msra.mxu0 %v900
          %993 = vmatprep.subr.mxu0 0.0
          %994 = vmatpush2.msra.mxu0 %v899
          %995 = vmatprep.mubr.f32.mxu0 %v870
          %996 = vmatmul.mubr.f32.gmra.mxu0 %v869
          %v997 = vpop.f32.mrf.mxu0
          %v998 = vadd.f32 0.0, %v997
          %v999 = vpop.f32.mrf.mxu0
          %1000 = vmatprep.mubr.f32.mxu0 %v873
          %1001 = vmatmul.mubr.f32.gmra.mxu0 %v872
          %v1002 = vpop.f32.mrf.mxu0
          %v1003 = vadd.f32 0.0, %v1002
          %v1004 = vpop.f32.mrf.mxu0
          %1005 = vdwg.mxu0
          %1006 = vmatprep.subr.mxu0 0.0
          %1007 = vmatpush1.msra.mxu0 %v930
          %1008 = vmatprep.subr.mxu0 0.0
          %1009 = vmatpush1.msra.mxu0 %v929
          %1010 = vmatprep.subr.mxu0 0.0
          %1011 = vmatpush1.msra.mxu0 %v928
          %1012 = vmatprep.subr.mxu0 0.0
          %1013 = vmatpush1.msra.mxu0 %v927
          %1014 = vmatprep.subr.mxu0 0.0
          %1015 = vmatpush1.msra.mxu0 %v926
          %1016 = vmatprep.subr.mxu0 0.0
          %1017 = vmatpush1.msra.mxu0 %v925
          %1018 = vmatprep.subr.mxu0 0.0
          %1019 = vmatpush1.msra.mxu0 %v924
          %1020 = vmatprep.subr.mxu0 0.0
          %1021 = vmatpush1.msra.mxu0 %v923
          %1022 = vmatprep.subr.mxu0 0.0
          %1023 = vmatpush1.msra.mxu0 %v922
          %1024 = vmatprep.subr.mxu0 0.0
          %1025 = vmatpush1.msra.mxu0 %v921
          %1026 = vmatprep.subr.mxu0 0.0
          %1027 = vmatpush1.msra.mxu0 %v920
          %1028 = vmatprep.subr.mxu0 0.0
          %1029 = vmatpush1.msra.mxu0 %v919
          %1030 = vmatprep.subr.mxu0 0.0
          %1031 = vmatpush1.msra.mxu0 %v918
          %1032 = vmatprep.subr.mxu0 0.0
          %1033 = vmatpush1.msra.mxu0 %v917
          %1034 = vmatprep.subr.mxu0 0.0
          %1035 = vmatpush1.msra.mxu0 %v916
          %1036 = vmatprep.subr.mxu0 0.0
          %1037 = vmatpush1.msra.mxu0 %v915
          %1038 = vmatprep.subr.mxu0 0.0
          %1039 = vmatpush2.msra.mxu0 0.0
          %1040 = vmatprep.subr.mxu0 0.0
          %1041 = vmatpush2.msra.mxu0 0.0
          %1042 = vmatprep.subr.mxu0 0.0
          %1043 = vmatpush2.msra.mxu0 0.0
          %1044 = vmatprep.subr.mxu0 0.0
          %1045 = vmatpush2.msra.mxu0 0.0
          %1046 = vmatprep.subr.mxu0 0.0
          %1047 = vmatpush2.msra.mxu0 0.0
          %1048 = vmatprep.subr.mxu0 0.0
          %1049 = vmatpush2.msra.mxu0 0.0
          %1050 = vmatprep.subr.mxu0 0.0
          %1051 = vmatpush2.msra.mxu0 0.0
          %1052 = vmatprep.subr.mxu0 0.0
          %1053 = vmatpush2.msra.mxu0 0.0
          %1054 = vmatprep.subr.mxu0 0.0
          %1055 = vmatpush2.msra.mxu0 0.0
          %1056 = vmatprep.subr.mxu0 0.0
          %1057 = vmatpush2.msra.mxu0 0.0
          %1058 = vmatprep.subr.mxu0 0.0
          %1059 = vmatpush2.msra.mxu0 0.0
          %1060 = vmatprep.subr.mxu0 0.0
          %1061 = vmatpush2.msra.mxu0 0.0
          %1062 = vmatprep.subr.mxu0 0.0
          %1063 = vmatpush2.msra.mxu0 0.0
          %1064 = vmatprep.subr.mxu0 0.0
          %1065 = vmatpush2.msra.mxu0 0.0
          %1066 = vmatprep.subr.mxu0 0.0
          %1067 = vmatpush2.msra.mxu0 0.0
          %1068 = vmatprep.subr.mxu0 0.0
          %1069 = vmatpush2.msra.mxu0 0.0
          %1070 = vmatprep.mubr.f32.mxu0 0.0
          %1071 = vmatmul.mubr.f32.gmra.mxu0 %v871
          %v1072 = vpop.f32.mrf.mxu0
          %v1073 = vadd.f32 %v998, %v1072
          %v1074 = vpop.f32.mrf.mxu0
          %1075 = vmatprep.mubr.f32.mxu0 0.0
          %1076 = vmatmul.mubr.f32.gmra.mxu0 %v874
          %v1077 = vpop.f32.mrf.mxu0
          %v1078 = vadd.f32 %v1003, %v1077
          %v1079 = vpop.f32.mrf.mxu0
          %1080 = vdwg.mxu0
          %v1081 = vadd.f32 %v881, %v1073
          %v1082 = vadd.f32 %v882, %v1078
          %1083 = vst [vmem:[#allocation3] sm:$0xff] %v1081
          %1084 = vst [vmem:[#allocation3 + $0x8] sm:$0xff] %v1082
        $region48: #{fwd.1} parent=35 // pred_fallthru
          _
        // Predicated region
        $region49: #{fwd.1} parent=35 // pred_check
          %p1085 = pneg %p573
        $region50: #{fwd.1} parent=35 // pred_check_branch
          %1087 = sbr.rel (%p1085) target = $region52
        $region51: #{fwd.1} parent=35 // pred_region
          %v1088 = vld [vmem:[#allocation3] sm:$0xff]
          %v1089 = vld [vmem:[#allocation3 + $0x8] sm:$0xff]
          %v1090 = vld [vmem:[%s1] sm:$0x1]
          %v1092 = vlaneseq
          %v1093 = vshrl.u32 %v1092, 7
          %v1094 = vsub.s32 0, %v1093
          %v1095 = vrot.slane %v1090, %v1094
          %v1097 = vadd.f32 %v1088, %v1095
          %v1098 = vadd.f32 %v1089, %v1095
          %1099 = vst [vmem:[%s306] sm:$0xff] %v1097
          %1100 = vst [vmem:[%s306 + $0x8] sm:$0xff] %v1098
        $region52: #{fwd.1} parent=35 // pred_fallthru
          _
        %s1101 = sand.u32 %s160, 1
        %s1102 = scalar_lea.sflag [#allocation5], %s1101
        %s1103 = sand.u32 %s160, 1
        %s1104 = smul.addr %s1103, 48
        %s1105 = scalar_lea.vmem [#allocation4], %s1104
        %s1106 = sand.u32 %s186, 1
        %s1107 = scalar_lea.sflag [#allocation7], %s1106
        %s1108 = sand.u32 %s186, 1
        %s1109 = smul.addr %s1108, 16
        %s1110 = scalar_lea.vmem [#allocation6], %s1109
        // Predicated region
        $region53: #{fwd.1} parent=35 // pred_check
          %p1111 = pneg %p170
        $region54: #{fwd.1} parent=35 // pred_check_branch
          %1113 = sbr.rel (%p1111) target = $region56
        $region55: #{fwd.1} parent=35 // pred_region
          %s1114 = ssub.s32 %s28, 1
          %p1115 = scmp.gt.s32.totalorder %s1114, 0
          %s1116 = scalar_select %p1115, %s1114, 0
          %s1117 = smul.u32 2, %s27
          %s1118 = smul.u32 3, %s1116
          %s1120 = ssub.s32 768, 768
          %1121 = vsyncadd %s1102, %s1120
          %s1122 = smul.addr %s1117, 3
          %s1123 = sadd.s32 %s1118, %s1122
          %s1124 = smul.addr %s1123, 128
          %s1125 = scalar_lea.hbm %s4, %s1124
          %s1126 = sshll.u32 %s1105, 4
          %s1127 = int_to_ptr.vmem [resolvable:$true] %s1126
          %1132 = dma.vmem_to_hbm [thread:$0]  %s1127, 768, %s1125, %s1102, 384, 384, 24
        $region56: #{fwd.1} parent=35 // pred_fallthru
          _
        // Predicated region
        $region57: #{fwd.1} parent=35 // pred_check
          %p1133 = pneg %p196
        $region58: #{fwd.1} parent=35 // pred_check_branch
          %1135 = sbr.rel (%p1133) target = $region60
        $region59: #{fwd.1} parent=35 // pred_region
          %s1136 = smul.u32 2, %s27
          %s1138 = ssub.s32 256, 256
          %1139 = vsyncadd %s1107, %s1138
          %s1140 = smul.addr %s1136, 128
          %s1141 = scalar_lea.hbm %s5, %s1140
          %s1142 = sshll.u32 %s1110, 4
          %s1143 = int_to_ptr.vmem [resolvable:$true] %s1142
          %1148 = dma.vmem_to_hbm [thread:$0]  %s1143, 256, %s1141, %s1107, 128, 128, 8
        $region60: #{fwd.1} parent=35 // pred_fallthru
          _
      $region36: #{fwd.1} parent=5 // pred_fallthru
        _
      %p1149 = scmp.le.s32.totalorder 2, %s18
      // Predicated region
      $region61: #{fwd.1} parent=5 // pred_check
        %p1150 = pneg %p1149
      $region62: #{fwd.1} parent=5 // pred_check_branch
        %1152 = sbr.rel (%p1150) target = $region64
      $region63: #{fwd.1} parent=5 // pred_region
        %s1153 = ssub.s32 %s18, 2
        // Predicated region
        $region65: #{fwd.1} parent=63 // pred_check
          %p1154 = pneg %p176
        $region66: #{fwd.1} parent=63 // pred_check_branch
          %1156 = sbr.rel (%p1154) target = $region68
        $region67: #{fwd.1} parent=63 // pred_region
          %s1157 = sand.u32 %s161, 1
          %s1158 = scalar_lea.sflag [#allocation5], %s1157
          %s1159 = sand.u32 %s161, 1
          %s1160 = smul.addr %s1159, 48
          %s1161 = scalar_lea.vmem [#allocation4], %s1160
          %1162 = dma.done %s1158, 768
        $region68: #{fwd.1} parent=63 // pred_fallthru
          _
        // Predicated region
        $region69: #{fwd.1} parent=63 // pred_check
          %p1163 = pneg %p202
        $region70: #{fwd.1} parent=63 // pred_check_branch
          %1165 = sbr.rel (%p1163) target = $region72
        $region71: #{fwd.1} parent=63 // pred_region
          %s1166 = sand.u32 %s187, 1
          %s1167 = scalar_lea.sflag [#allocation7], %s1166
          %s1168 = sand.u32 %s187, 1
          %s1169 = smul.addr %s1168, 16
          %s1170 = scalar_lea.vmem [#allocation6], %s1169
          %1171 = dma.done %s1167, 256
        $region72: #{fwd.1} parent=63 // pred_fallthru
          _
      $region64: #{fwd.1} parent=5 // pred_fallthru
        _
    $region6: #{fwd.1} parent=1 // loop_footer
      %s22 = sadd.s32 1, %s18
    $region7: #{fwd.1} parent=1 // loop_footer_branch
      %17 = sbr.rel target = $region3
    $region8: #{fwd.1} parent=1 // loop_exit
      _
    %1172 = vsyncpa [#allocation5], 1
    %s1173 = scalar_lea.sflag [#allocation5], 1
    %1174 = vsyncpa %s1173, 1
    %1175 = vsyncpa [#allocation7], 1
    %s1176 = scalar_lea.sflag [#allocation7], 1
    %1177 = vsyncpa %s1176, 1

</llo_original>
